<compile_context>
chip_gen: v7x
topology: tpu7x:2x2x1
jax: 0.10.0
libtpu: 0.0.40
codegen_flags: <defaults>
</compile_context>

<pallas_src>
import math
from dataclasses import dataclass

import jax
import jax.numpy as jnp
from jax.experimental import pallas as pl
from jax.experimental.pallas import tpu as pltpu

_EPS = 1e-5
_VMEM_LIMIT = 64 * 1024 * 1024       # above the 16/32 MiB scoped defaults, <= physical on all gens
_LN_VMEM_BUDGET = 24 * 1024 * 1024   # target per-step working set for LayerNorm tiles


# ----------------------------------------------------------------------------- LayerNorm kernels
def _layer_norm_kernel(x_ref, w_ref, o_ref):
    # x_ref: (tile_rows, D), w_ref: (1, D)  -- no-bias variant (Block uses bias=False)
    x = x_ref[...].astype(jnp.float32)
    d_inv = 1.0 / x.shape[-1]
    mean = jnp.sum(x, axis=-1, keepdims=True) * d_inv
    mean_sq = jnp.sum(x * x, axis=-1, keepdims=True) * d_inv
    var = jnp.maximum(mean_sq - mean * mean, 0.0)       # biased variance (PyTorch LN), clamped
    inv = jax.lax.rsqrt(var + _EPS)
    y = (x - mean) * inv * w_ref[...].astype(jnp.float32)
    o_ref[...] = y.astype(o_ref.dtype)


def _layer_norm_bias_kernel(x_ref, w_ref, b_ref, o_ref):
    x = x_ref[...].astype(jnp.float32)
    d_inv = 1.0 / x.shape[-1]
    mean = jnp.sum(x, axis=-1, keepdims=True) * d_inv
    mean_sq = jnp.sum(x * x, axis=-1, keepdims=True) * d_inv
    var = jnp.maximum(mean_sq - mean * mean, 0.0)
    inv = jax.lax.rsqrt(var + _EPS)
    y = (x - mean) * inv * w_ref[...].astype(jnp.float32) + b_ref[...].astype(jnp.float32)
    o_ref[...] = y.astype(o_ref.dtype)


def layer_norm(x, weight, bias=None, *, max_block_rows=1024):
    """LayerNorm over the last dim of x (PyTorch F.layer_norm semantics, eps=1e-5)."""
    orig_shape = x.shape
    D = orig_shape[-1]
    rows = 1
    for s in orig_shape[:-1]:
        rows *= s
    x2 = x.reshape(rows, D)
    w2 = weight.reshape(1, D)

    # Sublane quantum: keep bf16 tiles densely packed (16 rows/vreg); f32 -> 8.
    sub = 16 if x.dtype.itemsize == 2 else 8
    # Largest row tile under the VMEM budget: ~2x double-buffered input + 2x output blocks
    # + f32 intermediates  ->  ~6 * tile * D * 4 bytes per grid step.
    tile = max(sub, min(max_block_rows, _LN_VMEM_BUDGET // (6 * D * 4)))
    tile = (tile // sub) * sub
    if tile >= rows:
        tile = rows                      # full extent is always a legal block dim
    grid = (pl.cdiv(rows, tile),)        # padded last block is fine: rows are independent

    x_spec = pl.BlockSpec((tile, D), lambda i: (i, 0))
    w_spec = pl.BlockSpec((1, D), lambda i: (0, 0))
    o_spec = pl.BlockSpec((tile, D), lambda i: (i, 0))

    if bias is None:
        kernel, in_specs, args = _layer_norm_kernel, [x_spec, w_spec], (x2, w2)
    else:
        kernel = _layer_norm_bias_kernel
        in_specs = [x_spec, w_spec, w_spec]
        args = (x2, w2, bias.reshape(1, D))

    out2 = pl.pallas_call(
        kernel,
        out_shape=jax.ShapeDtypeStruct((rows, D), x.dtype),
        grid_spec=pltpu.PrefetchScalarGridSpec(
            num_scalar_prefetch=0,
            grid=grid,
            in_specs=in_specs,
            out_specs=o_spec,
        ),
        compiler_params=pltpu.CompilerParams(
            dimension_semantics=("parallel",),
            vmem_limit_bytes=_VMEM_LIMIT,
        ),
    )(*args)
    return out2.reshape(orig_shape)


# ----------------------------------------------------------------------------- tiled matmul
def _matmul_kernel(a_ref, b_ref, o_ref, acc_ref):
    @pl.when(pl.program_id(2) == 0)
    def _():
        acc_ref[...] = jnp.zeros_like(acc_ref)

    acc_ref[...] += jnp.dot(a_ref[...], b_ref[...], preferred_element_type=jnp.float32)

    @pl.when(pl.program_id(2) == pl.num_programs(2) - 1)
    def _():
        o_ref[...] = acc_ref[...].astype(o_ref.dtype)


def _pick_tile(dim, pref, quantum):
    t = pref
    while t >= quantum:
        if dim % t == 0:
            return t
        t //= 2
    return dim  # full extent (always legal)


def matmul(a, b):
    """a: (M, K), b: (K, N) -> (M, N); f32 accumulation on the MXU."""
    M, K = a.shape
    K2, N = b.shape
    assert K == K2
    tm = _pick_tile(M, 256, 8)
    tn = _pick_tile(N, 256, 128)
    tk = _pick_tile(K, 512, 128)
    grid = (M // tm, N // tn, K // tk)

    return pl.pallas_call(
        _matmul_kernel,
        out_shape=jax.ShapeDtypeStruct((M, N), a.dtype),
        grid_spec=pltpu.PrefetchScalarGridSpec(
            num_scalar_prefetch=0,
            grid=grid,
            in_specs=[
                pl.BlockSpec((tm, tk), lambda i, j, k: (i, k)),
                pl.BlockSpec((tk, tn), lambda i, j, k: (k, j)),
            ],
            out_specs=pl.BlockSpec((tm, tn), lambda i, j, k: (i, j)),
            scratch_shapes=[pltpu.VMEM((tm, tn), jnp.float32)],
        ),
        compiler_params=pltpu.CompilerParams(
            dimension_semantics=("parallel", "parallel", "arbitrary"),
            vmem_limit_bytes=_VMEM_LIMIT,
        ),
    )(a, b)


# ----------------------------------------------------------------------------- causal attention
def _attn_kernel(q_ref, k_ref, v_ref, o_ref):
    # refs: (1, T, head_dim) per (batch*head) grid step
    q = q_ref[0].astype(jnp.float32)                    # (T, hd)
    k = k_ref[0].astype(jnp.float32)
    v = v_ref[0].astype(jnp.float32)
    hd = q.shape[-1]
    scale = 1.0 / math.sqrt(hd)

    # q @ k^T without an explicit transpose (contract last dims of both)
    s = jax.lax.dot_general(q, k, (((1,), (1,)), ((), ())),
                            preferred_element_type=jnp.float32) * scale
    T = s.shape[0]
    row = jax.lax.broadcasted_iota(jnp.int32, (T, T), 0)
    col = jax.lax.broadcasted_iota(jnp.int32, (T, T), 1)
    s = jnp.where(row >= col, s, -1e30)                 # causal mask

    m = jnp.max(s, axis=-1, keepdims=True)
    e = jnp.exp(s - m)
    p = e / jnp.sum(e, axis=-1, keepdims=True)
    y = jnp.dot(p, v, preferred_element_type=jnp.float32)
    o_ref[0] = y.astype(o_ref.dtype)


def causal_attention(q, k, v):
    """q, k, v: (B, H, T, head_dim) -> (B, H, T, head_dim); softmax(q k^T / sqrt(d)) v, causal."""
    B, H, T, hd = q.shape
    qf = q.reshape(B * H, T, hd)
    kf = k.reshape(B * H, T, hd)
    vf = v.reshape(B * H, T, hd)

    spec = pl.BlockSpec((1, T, hd), lambda i: (i, 0, 0))
    out = pl.pallas_call(
        _attn_kernel,
        out_shape=jax.ShapeDtypeStruct((B * H, T, hd), q.dtype),
        grid_spec=pltpu.PrefetchScalarGridSpec(
            num_scalar_prefetch=0,
            grid=(B * H,),
            in_specs=[spec, spec, spec],
            out_specs=spec,
        ),
        compiler_params=pltpu.CompilerParams(
            dimension_semantics=("parallel",),
            vmem_limit_bytes=_VMEM_LIMIT,
        ),
    )(qf, kf, vf)
    return out.reshape(B, H, T, hd)


# ----------------------------------------------------------------------------- Block forward
@dataclass
class GPTConfig:
    n_embd: int = 32
    n_head: int = 4
    n_hidden: int = 128
    block_size: int = 8
    dropout: float = 0.0
    use_rope: bool = True
    rope_base: float = 10000.0


def rope_cos_sin(T, head_dim, base):
    d = head_dim // 2
    theta = 1.0 / (base ** (2.0 * jnp.arange(0, d, dtype=jnp.float32) / head_dim))
    t = jnp.arange(T, dtype=jnp.float32)
    freqs = jnp.outer(t, theta)                         # (T, d)
    return jnp.cos(freqs), jnp.sin(freqs)


def apply_rope(x, cos, sin):
    # x: (B, H, T, head_dim), interleaved (even, odd) pairs — matches the torch apply_rope.
    x0 = x[..., 0::2]
    x1 = x[..., 1::2]
    r0 = x0 * cos - x1 * sin
    r1 = x0 * sin + x1 * cos
    return jnp.stack([r0, r1], axis=-1).reshape(x.shape)


def gpt_block_forward(x, params, cfg):
    B, T, C = x.shape
    H = cfg.n_head
    hd = C // H

    # --- attention branch: x = x + attn(ln_1(x)) ---
    h = layer_norm(x, params["ln_1_w"])                          # bias=False LayerNorm
    qkv = matmul(h.reshape(B * T, C), params["c_attn_w"])        # (B*T, 3C)
    q, k, v = jnp.split(qkv, 3, axis=-1)

    def to_heads(z):
        return z.reshape(B, T, H, hd).transpose(0, 2, 1, 3)      # (B, H, T, hd)

    q, k, v = to_heads(q), to_heads(k), to_heads(v)
    if cfg.use_rope:
        cos, sin = rope_cos_sin(T, hd, cfg.rope_base)
        q = apply_rope(q, cos, sin)
        k = apply_rope(k, cos, sin)
    y = causal_attention(q, k, v)                                # (B, H, T, hd)
    y = y.transpose(0, 2, 1, 3).reshape(B * T, C)
    y = matmul(y, params["attn_proj_w"])
    x = x + y.reshape(B, T, C)                                   # resid dropout: identity (p=0)

    # --- MLP branch: x = x + mlp(ln_2(x)) ---
    h2 = layer_norm(x, params["ln_2_w"])
    a = matmul(h2.reshape(B * T, C), params["c_fc_w"])
    # TODO(synk): exact (erf) GELU applied in plain JAX between the MLP matmul kernels;
    #             erf has no guaranteed Mosaic lowering, so it is not fused into the kernel.
    a = jax.nn.gelu(a, approximate=False)
    m = matmul(a, params["mlp_proj_w"])
    x = x + m.reshape(B, T, C)                                   # mlp dropout: identity (p=0)
    return x


# ----------------------------------------------------------------------------- reference
def reference_block(x, params, cfg):
    def ln(z, w):
        mu = jnp.mean(z, axis=-1, keepdims=True)
        var = jnp.mean((z - mu) ** 2, axis=-1, keepdims=True)
        return (z - mu) / jnp.sqrt(var + _EPS) * w

    B, T, C = x.shape
    H, hd = cfg.n_head, C // cfg.n_head
    h = ln(x, params["ln_1_w"])
    qkv = h.reshape(B * T, C) @ params["c_attn_w"]
    q, k, v = jnp.split(qkv, 3, axis=-1)
    q = q.reshape(B, T, H, hd).transpose(0, 2, 1, 3)
    k = k.reshape(B, T, H, hd).transpose(0, 2, 1, 3)
    v = v.reshape(B, T, H, hd).transpose(0, 2, 1, 3)
    if cfg.use_rope:
        cos, sin = rope_cos_sin(T, hd, cfg.rope_base)
        q = apply_rope(q, cos, sin)
        k = apply_rope(k, cos, sin)
    s = jnp.einsum("bhqd,bhkd->bhqk", q, k) / math.sqrt(hd)
    causal = jnp.tril(jnp.ones((T, T), dtype=bool))
    s = jnp.where(causal, s, -1e30)
    p = jax.nn.softmax(s, axis=-1)
    y = jnp.einsum("bhqk,bhkd->bhqd", p, v)
    y = y.transpose(0, 2, 1, 3).reshape(B * T, C) @ params["attn_proj_w"]
    x = x + y.reshape(B, T, C)
    h2 = ln(x, params["ln_2_w"])
    a = jax.nn.gelu(h2.reshape(B * T, C) @ params["c_fc_w"], approximate=False)
    x = x + (a @ params["mlp_proj_w"]).reshape(B, T, C)
    return x


if __name__ == "__main__":
    cfg = GPTConfig(n_embd=32, n_head=4, n_hidden=128, block_size=8,
                    dropout=0.0, use_rope=True, rope_base=10000.0)
    B, T, C = 2, 8, cfg.n_embd

    key = jax.random.PRNGKey(0)
    kx, k1, k2, k3, k4 = jax.random.split(key, 5)
    x = jax.random.normal(kx, (B, T, C), dtype=jnp.float32)
    scale = 0.1
    params = {
        "ln_1_w": jnp.ones((C,), jnp.float32),
        "ln_2_w": jnp.ones((C,), jnp.float32),
        "c_attn_w": scale * jax.random.normal(k1, (C, 3 * C), jnp.float32),
        "attn_proj_w": scale * jax.random.normal(k2, (C, C), jnp.float32),
        "c_fc_w": scale * jax.random.normal(k3, (C, cfg.n_hidden), jnp.float32),
        "mlp_proj_w": scale * jax.random.normal(k4, (cfg.n_hidden, C), jnp.float32),
    }

    fwd = jax.jit(lambda xx, pp: gpt_block_forward(xx, pp, cfg))
    out = jax.block_until_ready(fwd(x, params))

    ref = reference_block(x, params, cfg)
    assert out.shape == (B, T, C)
    assert jnp.allclose(out, ref, atol=2e-3, rtol=2e-3), "Block output mismatch vs reference"

    # Also exercise the bias-enabled LayerNorm kernel path (stand-alone sanity check).
    w = jax.random.normal(k1, (C,), jnp.float32) * 0.5 + 1.0
    b = jax.random.normal(k2, (C,), jnp.float32) * 0.1
    ln_out = jax.block_until_ready(layer_norm(x, w, b))
    mu = jnp.mean(x, axis=-1, keepdims=True)
    var = jnp.mean((x - mu) ** 2, axis=-1, keepdims=True)
    ln_ref = (x - mu) / jnp.sqrt(var + _EPS) * w + b
    assert jnp.allclose(ln_out, ln_ref, atol=1e-4, rtol=1e-4), "LayerNorm(bias) mismatch"

    print("KERNEL_OK")
</pallas_src>

<mosaic_0001>
module attributes {stable_mosaic.version = 11 : i64} {
  func.func @_matmul_kernel(%arg0: i32, %arg1: i32, %arg2: i32, %arg3: memref<16x32xf32, #tpu.memory_space<vmem>>, %arg4: memref<32x96xf32, #tpu.memory_space<vmem>>, %arg5: memref<16x96xf32, #tpu.memory_space<vmem>>, %arg6: memref<16x96xf32, #tpu.memory_space<vmem>>) attributes {dimension_semantics = [#tpu.dimension_semantics<parallel>, #tpu.dimension_semantics<parallel>, #tpu.dimension_semantics<arbitrary>], iteration_bounds = array<i64: 1, 1, 1>, scalar_prefetch = 0 : i64, scratch_operands = 1 : i64, tpu.core_type = #tpu.core_type<tc>, window_params = [{transform_indices = @transform_0, window_bounds = array<i64: 16, 32>}, {transform_indices = @transform_1, window_bounds = array<i64: 32, 96>}, {transform_indices = @transform_2, window_bounds = array<i64: 16, 96>}]} {
    %c0_i32 = arith.constant 0 : i32
    %0 = arith.cmpi eq, %arg2, %c0_i32 : i32
    %1 = arith.extui %0 : i1 to i32
    %c0_i32_0 = arith.constant 0 : i32
    %2 = arith.cmpi ne, %1, %c0_i32_0 : i32
    scf.if %2 {
      %cst_10 = arith.constant 0.000000e+00 : f32
      %12 = vector.broadcast %cst_10 : f32 to vector<16x96xf32>
      %c0_11 = arith.constant 0 : index
      %c0_12 = arith.constant 0 : index
      %13 = vector.load %arg6[%c0_11, %c0_12] : memref<16x96xf32, #tpu.memory_space<vmem>>, vector<16x96xf32>
      tpu.vector_store %arg6[%c0_11, %c0_12], %12 {strides = array<i32>} : memref<16x96xf32, #tpu.memory_space<vmem>>, vector<16x96xf32>,
    } else {
    }
    %c0 = arith.constant 0 : index
    %c0_1 = arith.constant 0 : index
    %3 = vector.load %arg6[%c0, %c0_1] : memref<16x96xf32, #tpu.memory_space<vmem>>, vector<16x96xf32>
    %c0_2 = arith.constant 0 : index
    %c0_3 = arith.constant 0 : index
    %4 = vector.load %arg3[%c0_2, %c0_3] : memref<16x32xf32, #tpu.memory_space<vmem>>, vector<16x32xf32>
    %c0_4 = arith.constant 0 : index
    %c0_5 = arith.constant 0 : index
    %5 = vector.load %arg4[%c0_4, %c0_5] : memref<32x96xf32, #tpu.memory_space<vmem>>, vector<32x96xf32>
    %cst = arith.constant dense<0.000000e+00> : vector<16x96xf32>
    %6 = tpu.matmul %4, %5, %cst {dimension_numbers = #tpu.dot_dimension_numbers<[1], [0], [0], [1], [0, 0, 1, 1], [], []>} : vector<16x32xf32>, vector<32x96xf32>, vector<16x96xf32> -> vector<16x96xf32>
    %7 = arith.addf %3, %6 : vector<16x96xf32>
    %c0_6 = arith.constant 0 : index
    %c0_7 = arith.constant 0 : index
    %8 = vector.load %arg6[%c0_6, %c0_7] : memref<16x96xf32, #tpu.memory_space<vmem>>, vector<16x96xf32>
    tpu.vector_store %arg6[%c0_6, %c0_7], %7 {strides = array<i32>} : memref<16x96xf32, #tpu.memory_space<vmem>>, vector<16x96xf32>,
    %c0_i32_8 = arith.constant 0 : i32
    %9 = arith.cmpi eq, %arg2, %c0_i32_8 : i32
    %10 = arith.extui %9 : i1 to i32
    %c0_i32_9 = arith.constant 0 : i32
    %11 = arith.cmpi ne, %10, %c0_i32_9 : i32
    scf.if %11 {
      %c0_10 = arith.constant 0 : index
      %c0_11 = arith.constant 0 : index
      %12 = vector.load %arg6[%c0_10, %c0_11] : memref<16x96xf32, #tpu.memory_space<vmem>>, vector<16x96xf32>
      %c0_12 = arith.constant 0 : index
      %c0_13 = arith.constant 0 : index
      %13 = vector.load %arg5[%c0_12, %c0_13] : memref<16x96xf32, #tpu.memory_space<vmem>>, vector<16x96xf32>
      tpu.vector_store %arg5[%c0_12, %c0_13], %12 {strides = array<i32>} : memref<16x96xf32, #tpu.memory_space<vmem>>, vector<16x96xf32>,
    } else {
    }
    return
  }
  func.func @transform_0(%arg0: i32, %arg1: i32, %arg2: i32) -> (i32, i32) {
    %c0_i32 = arith.constant 0 : i32
    return %arg0, %arg2 : i32, i32
  }
  func.func @transform_1(%arg0: i32, %arg1: i32, %arg2: i32) -> (i32, i32) {
    %c0_i32 = arith.constant 0 : i32
    return %arg2, %arg1 : i32, i32
  }
  func.func @transform_2(%arg0: i32, %arg1: i32, %arg2: i32) -> (i32, i32) {
    %c0_i32 = arith.constant 0 : i32
    return %arg0, %arg1 : i32, i32
  }
}

module attributes {stable_mosaic.version = 11 : i64} {
  func.func @_layer_norm_kernel(%arg0: i32, %arg1: memref<16x32xf32, #tpu.memory_space<vmem>>, %arg2: memref<1x32xf32, #tpu.memory_space<vmem>>, %arg3: memref<16x32xf32, #tpu.memory_space<vmem>>) attributes {dimension_semantics = [#tpu.dimension_semantics<parallel>], iteration_bounds = array<i64: 1>, scalar_prefetch = 0 : i64, scratch_operands = 0 : i64, tpu.core_type = #tpu.core_type<tc>, window_params = [{transform_indices = @transform_0, window_bounds = array<i64: 16, 32>}, {pipeline_mode = #tpu.pipeline_mode<synchronous>, transform_indices = @transform_1, window_bounds = array<i64: 1, 32>}, {transform_indices = @transform_2, window_bounds = array<i64: 16, 32>}]} {
    %c0 = arith.constant 0 : index
    %c0_0 = arith.constant 0 : index
    %0 = vector.load %arg1[%c0, %c0_0] : memref<16x32xf32, #tpu.memory_space<vmem>>, vector<16x32xf32>
    %cst = arith.constant dense<0.000000e+00> : vector<16xf32>
    %1 = vector.multi_reduction <add>, %0, %cst [1] : vector<16x32xf32> to vector<16xf32>
    %2 = vector.shape_cast %1 : vector<16xf32> to vector<16x1xf32>
    %cst_1 = arith.constant 3.125000e-02 : f32
    %3 = vector.broadcast %cst_1 : f32 to vector<16x1xf32>
    %4 = arith.mulf %2, %3 : vector<16x1xf32>
    %5 = arith.mulf %0, %0 : vector<16x32xf32>
    %cst_2 = arith.constant dense<0.000000e+00> : vector<16xf32>
    %6 = vector.multi_reduction <add>, %5, %cst_2 [1] : vector<16x32xf32> to vector<16xf32>
    %7 = vector.shape_cast %6 : vector<16xf32> to vector<16x1xf32>
    %cst_3 = arith.constant 3.125000e-02 : f32
    %8 = vector.broadcast %cst_3 : f32 to vector<16x1xf32>
    %9 = arith.mulf %7, %8 : vector<16x1xf32>
    %10 = arith.mulf %4, %4 : vector<16x1xf32>
    %11 = arith.subf %9, %10 : vector<16x1xf32>
    %cst_4 = arith.constant 0.000000e+00 : f32
    %12 = vector.broadcast %cst_4 : f32 to vector<16x1xf32>
    %13 = arith.maximumf %11, %12 : vector<16x1xf32>
    %cst_5 = arith.constant 9.99999974E-6 : f32
    %14 = vector.broadcast %cst_5 : f32 to vector<16x1xf32>
    %15 = arith.addf %13, %14 : vector<16x1xf32>
    %16 = math.rsqrt %15 : vector<16x1xf32>
    %17 = vector.broadcast %4 : vector<16x1xf32> to vector<16x32xf32>
    %18 = arith.subf %0, %17 : vector<16x32xf32>
    %19 = vector.broadcast %16 : vector<16x1xf32> to vector<16x32xf32>
    %20 = arith.mulf %18, %19 : vector<16x32xf32>
    %c0_6 = arith.constant 0 : index
    %c0_7 = arith.constant 0 : index
    %21 = vector.load %arg2[%c0_6, %c0_7] : memref<1x32xf32, #tpu.memory_space<vmem>>, vector<1x32xf32>
    %22 = vector.broadcast %21 : vector<1x32xf32> to vector<16x32xf32>
    %23 = arith.mulf %20, %22 : vector<16x32xf32>
    %c0_8 = arith.constant 0 : index
    %c0_9 = arith.constant 0 : index
    %24 = vector.load %arg3[%c0_8, %c0_9] : memref<16x32xf32, #tpu.memory_space<vmem>>, vector<16x32xf32>
    tpu.vector_store %arg3[%c0_8, %c0_9], %23 {strides = array<i32>} : memref<16x32xf32, #tpu.memory_space<vmem>>, vector<16x32xf32>,
    return
  }
  func.func @transform_0(%arg0: i32) -> (i32, i32) {
    %c0_i32 = arith.constant 0 : i32
    %c0_i32_0 = arith.constant 0 : i32
    return %arg0, %c0_i32 : i32, i32
  }
  func.func @transform_1(%arg0: i32) -> (i32, i32) {
    %c0_i32 = arith.constant 0 : i32
    %c0_i32_0 = arith.constant 0 : i32
    %c0_i32_1 = arith.constant 0 : i32
    return %c0_i32, %c0_i32_0 : i32, i32
  }
  func.func @transform_2(%arg0: i32) -> (i32, i32) {
    %c0_i32 = arith.constant 0 : i32
    %c0_i32_0 = arith.constant 0 : i32
    return %arg0, %c0_i32 : i32, i32
  }
}

module attributes {stable_mosaic.version = 11 : i64} {
  func.func @_attn_kernel(%arg0: i32, %arg1: memref<1x8x8xf32, #tpu.memory_space<vmem>>, %arg2: memref<1x8x8xf32, #tpu.memory_space<vmem>>, %arg3: memref<1x8x8xf32, #tpu.memory_space<vmem>>, %arg4: memref<1x8x8xf32, #tpu.memory_space<vmem>>) attributes {dimension_semantics = [#tpu.dimension_semantics<parallel>], iteration_bounds = array<i64: 8>, scalar_prefetch = 0 : i64, scratch_operands = 0 : i64, tpu.core_type = #tpu.core_type<tc>, window_params = [{transform_indices = @transform_0, window_bounds = array<i64: 1, 8, 8>}, {transform_indices = @transform_1, window_bounds = array<i64: 1, 8, 8>}, {transform_indices = @transform_2, window_bounds = array<i64: 1, 8, 8>}, {transform_indices = @transform_3, window_bounds = array<i64: 1, 8, 8>}]} {
    %c0 = arith.constant 0 : index
    %c0_0 = arith.constant 0 : index
    %c0_1 = arith.constant 0 : index
    %0 = vector.load %arg1[%c0, %c0_0, %c0_1] : memref<1x8x8xf32, #tpu.memory_space<vmem>>, vector<1x8x8xf32>
    %1 = vector.shape_cast %0 : vector<1x8x8xf32> to vector<8x8xf32>
    %c0_2 = arith.constant 0 : index
    %c0_3 = arith.constant 0 : index
    %c0_4 = arith.constant 0 : index
    %2 = vector.load %arg2[%c0_2, %c0_3, %c0_4] : memref<1x8x8xf32, #tpu.memory_space<vmem>>, vector<1x8x8xf32>
    %3 = vector.shape_cast %2 : vector<1x8x8xf32> to vector<8x8xf32>
    %c0_5 = arith.constant 0 : index
    %c0_6 = arith.constant 0 : index
    %c0_7 = arith.constant 0 : index
    %4 = vector.load %arg3[%c0_5, %c0_6, %c0_7] : memref<1x8x8xf32, #tpu.memory_space<vmem>>, vector<1x8x8xf32>
    %5 = vector.shape_cast %4 : vector<1x8x8xf32> to vector<8x8xf32>
    %cst = arith.constant dense<0.000000e+00> : vector<8x8xf32>
    %6 = tpu.matmul %1, %3, %cst {dimension_numbers = #tpu.dot_dimension_numbers<[1], [1], [0], [0], [0, 0, 1, 0], [], []>} : vector<8x8xf32>, vector<8x8xf32>, vector<8x8xf32> -> vector<8x8xf32>
    %cst_8 = arith.constant 0.353553385 : f32
    %7 = vector.broadcast %cst_8 : f32 to vector<8x8xf32>
    %8 = arith.mulf %6, %7 : vector<8x8xf32>
    %9 = tpu.iota {dimensions = array<i32: 0>} : vector<8x8xi32>
    %10 = tpu.iota {dimensions = array<i32: 1>} : vector<8x8xi32>
    %11 = arith.cmpi sge, %9, %10 : vector<8x8xi32>
    %cst_9 = arith.constant -1.000000e+30 : f32
    %12 = vector.broadcast %cst_9 : f32 to vector<8x8xf32>
    %13 = arith.select %11, %8, %12 : vector<8x8xi1>, vector<8x8xf32>
    %cst_10 = arith.constant dense<0xFF800000> : vector<8xf32>
    %14 = vector.multi_reduction <maximumf>, %13, %cst_10 [1] : vector<8x8xf32> to vector<8xf32>
    %15 = vector.shape_cast %14 : vector<8xf32> to vector<8x1xf32>
    %16 = vector.broadcast %15 : vector<8x1xf32> to vector<8x8xf32>
    %17 = arith.subf %13, %16 : vector<8x8xf32>
    %18 = math.exp %17 : vector<8x8xf32>
    %cst_11 = arith.constant dense<0.000000e+00> : vector<8xf32>
    %19 = vector.multi_reduction <add>, %18, %cst_11 [1] : vector<8x8xf32> to vector<8xf32>
    %20 = vector.shape_cast %19 : vector<8xf32> to vector<8x1xf32>
    %21 = vector.broadcast %20 : vector<8x1xf32> to vector<8x8xf32>
    %22 = arith.divf %18, %21 : vector<8x8xf32>
    %cst_12 = arith.constant dense<0.000000e+00> : vector<8x8xf32>
    %23 = tpu.matmul %22, %5, %cst_12 {dimension_numbers = #tpu.dot_dimension_numbers<[1], [0], [0], [1], [0, 0, 1, 1], [], []>} : vector<8x8xf32>, vector<8x8xf32>, vector<8x8xf32> -> vector<8x8xf32>
    %c0_13 = arith.constant 0 : index
    %c0_14 = arith.constant 0 : index
    %c0_15 = arith.constant 0 : index
    %24 = vector.load %arg4[%c0_13, %c0_14, %c0_15] : memref<1x8x8xf32, #tpu.memory_space<vmem>>, vector<1x8x8xf32>
    %25 = vector.shape_cast %24 : vector<1x8x8xf32> to vector<8x8xf32>
    %26 = vector.shape_cast %23 : vector<8x8xf32> to vector<1x8x8xf32>
    tpu.vector_store %arg4[%c0_13, %c0_14, %c0_15], %26 {strides = array<i32>} : memref<1x8x8xf32, #tpu.memory_space<vmem>>, vector<1x8x8xf32>,
    return
  }
  func.func @transform_0(%arg0: i32) -> (i32, i32, i32) {
    %c0_i32 = arith.constant 0 : i32
    %c0_i32_0 = arith.constant 0 : i32
    %c0_i32_1 = arith.constant 0 : i32
    return %arg0, %c0_i32, %c0_i32_0 : i32, i32, i32
  }
  func.func @transform_1(%arg0: i32) -> (i32, i32, i32) {
    %c0_i32 = arith.constant 0 : i32
    %c0_i32_0 = arith.constant 0 : i32
    %c0_i32_1 = arith.constant 0 : i32
    return %arg0, %c0_i32, %c0_i32_0 : i32, i32, i32
  }
  func.func @transform_2(%arg0: i32) -> (i32, i32, i32) {
    %c0_i32 = arith.constant 0 : i32
    %c0_i32_0 = arith.constant 0 : i32
    %c0_i32_1 = arith.constant 0 : i32
    return %arg0, %c0_i32, %c0_i32_0 : i32, i32, i32
  }
  func.func @transform_3(%arg0: i32) -> (i32, i32, i32) {
    %c0_i32 = arith.constant 0 : i32
    %c0_i32_0 = arith.constant 0 : i32
    %c0_i32_1 = arith.constant 0 : i32
    return %arg0, %c0_i32, %c0_i32_0 : i32, i32, i32
  }
}

module attributes {stable_mosaic.version = 11 : i64} {
  func.func @_matmul_kernel(%arg0: i32, %arg1: i32, %arg2: i32, %arg3: memref<16x32xf32, #tpu.memory_space<vmem>>, %arg4: memref<32x128xf32, #tpu.memory_space<vmem>>, %arg5: memref<16x128xf32, #tpu.memory_space<vmem>>, %arg6: memref<16x128xf32, #tpu.memory_space<vmem>>) attributes {dimension_semantics = [#tpu.dimension_semantics<parallel>, #tpu.dimension_semantics<parallel>, #tpu.dimension_semantics<arbitrary>], iteration_bounds = array<i64: 1, 1, 1>, scalar_prefetch = 0 : i64, scratch_operands = 1 : i64, tpu.core_type = #tpu.core_type<tc>, window_params = [{transform_indices = @transform_0, window_bounds = array<i64: 16, 32>}, {transform_indices = @transform_1, window_bounds = array<i64: 32, 128>}, {transform_indices = @transform_2, window_bounds = array<i64: 16, 128>}]} {
    %c0_i32 = arith.constant 0 : i32
    %0 = arith.cmpi eq, %arg2, %c0_i32 : i32
    %1 = arith.extui %0 : i1 to i32
    %c0_i32_0 = arith.constant 0 : i32
    %2 = arith.cmpi ne, %1, %c0_i32_0 : i32
    scf.if %2 {
      %cst_10 = arith.constant 0.000000e+00 : f32
      %12 = vector.broadcast %cst_10 : f32 to vector<16x128xf32>
      %c0_11 = arith.constant 0 : index
      %c0_12 = arith.constant 0 : index
      %13 = vector.load %arg6[%c0_11, %c0_12] : memref<16x128xf32, #tpu.memory_space<vmem>>, vector<16x128xf32>
      tpu.vector_store %arg6[%c0_11, %c0_12], %12 {strides = array<i32>} : memref<16x128xf32, #tpu.memory_space<vmem>>, vector<16x128xf32>,
    } else {
    }
    %c0 = arith.constant 0 : index
    %c0_1 = arith.constant 0 : index
    %3 = vector.load %arg6[%c0, %c0_1] : memref<16x128xf32, #tpu.memory_space<vmem>>, vector<16x128xf32>
    %c0_2 = arith.constant 0 : index
    %c0_3 = arith.constant 0 : index
    %4 = vector.load %arg3[%c0_2, %c0_3] : memref<16x32xf32, #tpu.memory_space<vmem>>, vector<16x32xf32>
    %c0_4 = arith.constant 0 : index
    %c0_5 = arith.constant 0 : index
    %5 = vector.load %arg4[%c0_4, %c0_5] : memref<32x128xf32, #tpu.memory_space<vmem>>, vector<32x128xf32>
    %cst = arith.constant dense<0.000000e+00> : vector<16x128xf32>
    %6 = tpu.matmul %4, %5, %cst {dimension_numbers = #tpu.dot_dimension_numbers<[1], [0], [0], [1], [0, 0, 1, 1], [], []>} : vector<16x32xf32>, vector<32x128xf32>, vector<16x128xf32> -> vector<16x128xf32>
    %7 = arith.addf %3, %6 : vector<16x128xf32>
    %c0_6 = arith.constant 0 : index
    %c0_7 = arith.constant 0 : index
    %8 = vector.load %arg6[%c0_6, %c0_7] : memref<16x128xf32, #tpu.memory_space<vmem>>, vector<16x128xf32>
    tpu.vector_store %arg6[%c0_6, %c0_7], %7 {strides = array<i32>} : memref<16x128xf32, #tpu.memory_space<vmem>>, vector<16x128xf32>,
    %c0_i32_8 = arith.constant 0 : i32
    %9 = arith.cmpi eq, %arg2, %c0_i32_8 : i32
    %10 = arith.extui %9 : i1 to i32
    %c0_i32_9 = arith.constant 0 : i32
    %11 = arith.cmpi ne, %10, %c0_i32_9 : i32
    scf.if %11 {
      %c0_10 = arith.constant 0 : index
      %c0_11 = arith.constant 0 : index
      %12 = vector.load %arg6[%c0_10, %c0_11] : memref<16x128xf32, #tpu.memory_space<vmem>>, vector<16x128xf32>
      %c0_12 = arith.constant 0 : index
      %c0_13 = arith.constant 0 : index
      %13 = vector.load %arg5[%c0_12, %c0_13] : memref<16x128xf32, #tpu.memory_space<vmem>>, vector<16x128xf32>
      tpu.vector_store %arg5[%c0_12, %c0_13], %12 {strides = array<i32>} : memref<16x128xf32, #tpu.memory_space<vmem>>, vector<16x128xf32>,
    } else {
    }
    return
  }
  func.func @transform_0(%arg0: i32, %arg1: i32, %arg2: i32) -> (i32, i32) {
    %c0_i32 = arith.constant 0 : i32
    return %arg0, %arg2 : i32, i32
  }
  func.func @transform_1(%arg0: i32, %arg1: i32, %arg2: i32) -> (i32, i32) {
    %c0_i32 = arith.constant 0 : i32
    return %arg2, %arg1 : i32, i32
  }
  func.func @transform_2(%arg0: i32, %arg1: i32, %arg2: i32) -> (i32, i32) {
    %c0_i32 = arith.constant 0 : i32
    return %arg0, %arg1 : i32, i32
  }
}

module attributes {stable_mosaic.version = 11 : i64} {
  func.func @_matmul_kernel(%arg0: i32, %arg1: i32, %arg2: i32, %arg3: memref<16x32xf32, #tpu.memory_space<vmem>>, %arg4: memref<32x32xf32, #tpu.memory_space<vmem>>, %arg5: memref<16x32xf32, #tpu.memory_space<vmem>>, %arg6: memref<16x32xf32, #tpu.memory_space<vmem>>) attributes {dimension_semantics = [#tpu.dimension_semantics<parallel>, #tpu.dimension_semantics<parallel>, #tpu.dimension_semantics<arbitrary>], iteration_bounds = array<i64: 1, 1, 1>, scalar_prefetch = 0 : i64, scratch_operands = 1 : i64, tpu.core_type = #tpu.core_type<tc>, window_params = [{transform_indices = @transform_0, window_bounds = array<i64: 16, 32>}, {transform_indices = @transform_1, window_bounds = array<i64: 32, 32>}, {transform_indices = @transform_2, window_bounds = array<i64: 16, 32>}]} {
    %c0_i32 = arith.constant 0 : i32
    %0 = arith.cmpi eq, %arg2, %c0_i32 : i32
    %1 = arith.extui %0 : i1 to i32
    %c0_i32_0 = arith.constant 0 : i32
    %2 = arith.cmpi ne, %1, %c0_i32_0 : i32
    scf.if %2 {
      %cst_10 = arith.constant 0.000000e+00 : f32
      %12 = vector.broadcast %cst_10 : f32 to vector<16x32xf32>
      %c0_11 = arith.constant 0 : index
      %c0_12 = arith.constant 0 : index
      %13 = vector.load %arg6[%c0_11, %c0_12] : memref<16x32xf32, #tpu.memory_space<vmem>>, vector<16x32xf32>
      tpu.vector_store %arg6[%c0_11, %c0_12], %12 {strides = array<i32>} : memref<16x32xf32, #tpu.memory_space<vmem>>, vector<16x32xf32>,
    } else {
    }
    %c0 = arith.constant 0 : index
    %c0_1 = arith.constant 0 : index
    %3 = vector.load %arg6[%c0, %c0_1] : memref<16x32xf32, #tpu.memory_space<vmem>>, vector<16x32xf32>
    %c0_2 = arith.constant 0 : index
    %c0_3 = arith.constant 0 : index
    %4 = vector.load %arg3[%c0_2, %c0_3] : memref<16x32xf32, #tpu.memory_space<vmem>>, vector<16x32xf32>
    %c0_4 = arith.constant 0 : index
    %c0_5 = arith.constant 0 : index
    %5 = vector.load %arg4[%c0_4, %c0_5] : memref<32x32xf32, #tpu.memory_space<vmem>>, vector<32x32xf32>
    %cst = arith.constant dense<0.000000e+00> : vector<16x32xf32>
    %6 = tpu.matmul %4, %5, %cst {dimension_numbers = #tpu.dot_dimension_numbers<[1], [0], [0], [1], [0, 0, 1, 1], [], []>} : vector<16x32xf32>, vector<32x32xf32>, vector<16x32xf32> -> vector<16x32xf32>
    %7 = arith.addf %3, %6 : vector<16x32xf32>
    %c0_6 = arith.constant 0 : index
    %c0_7 = arith.constant 0 : index
    %8 = vector.load %arg6[%c0_6, %c0_7] : memref<16x32xf32, #tpu.memory_space<vmem>>, vector<16x32xf32>
    tpu.vector_store %arg6[%c0_6, %c0_7], %7 {strides = array<i32>} : memref<16x32xf32, #tpu.memory_space<vmem>>, vector<16x32xf32>,
    %c0_i32_8 = arith.constant 0 : i32
    %9 = arith.cmpi eq, %arg2, %c0_i32_8 : i32
    %10 = arith.extui %9 : i1 to i32
    %c0_i32_9 = arith.constant 0 : i32
    %11 = arith.cmpi ne, %10, %c0_i32_9 : i32
    scf.if %11 {
      %c0_10 = arith.constant 0 : index
      %c0_11 = arith.constant 0 : index
      %12 = vector.load %arg6[%c0_10, %c0_11] : memref<16x32xf32, #tpu.memory_space<vmem>>, vector<16x32xf32>
      %c0_12 = arith.constant 0 : index
      %c0_13 = arith.constant 0 : index
      %13 = vector.load %arg5[%c0_12, %c0_13] : memref<16x32xf32, #tpu.memory_space<vmem>>, vector<16x32xf32>
      tpu.vector_store %arg5[%c0_12, %c0_13], %12 {strides = array<i32>} : memref<16x32xf32, #tpu.memory_space<vmem>>, vector<16x32xf32>,
    } else {
    }
    return
  }
  func.func @transform_0(%arg0: i32, %arg1: i32, %arg2: i32) -> (i32, i32) {
    %c0_i32 = arith.constant 0 : i32
    return %arg0, %arg2 : i32, i32
  }
  func.func @transform_1(%arg0: i32, %arg1: i32, %arg2: i32) -> (i32, i32) {
    %c0_i32 = arith.constant 0 : i32
    return %arg2, %arg1 : i32, i32
  }
  func.func @transform_2(%arg0: i32, %arg1: i32, %arg2: i32) -> (i32, i32) {
    %c0_i32 = arith.constant 0 : i32
    return %arg0, %arg1 : i32, i32
  }
}

module attributes {stable_mosaic.version = 11 : i64} {
  func.func @_matmul_kernel(%arg0: i32, %arg1: i32, %arg2: i32, %arg3: memref<16x128xf32, #tpu.memory_space<vmem>>, %arg4: memref<128x32xf32, #tpu.memory_space<vmem>>, %arg5: memref<16x32xf32, #tpu.memory_space<vmem>>, %arg6: memref<16x32xf32, #tpu.memory_space<vmem>>) attributes {dimension_semantics = [#tpu.dimension_semantics<parallel>, #tpu.dimension_semantics<parallel>, #tpu.dimension_semantics<arbitrary>], iteration_bounds = array<i64: 1, 1, 1>, scalar_prefetch = 0 : i64, scratch_operands = 1 : i64, tpu.core_type = #tpu.core_type<tc>, window_params = [{transform_indices = @transform_0, window_bounds = array<i64: 16, 128>}, {transform_indices = @transform_1, window_bounds = array<i64: 128, 32>}, {transform_indices = @transform_2, window_bounds = array<i64: 16, 32>}]} {
    %c0_i32 = arith.constant 0 : i32
    %0 = arith.cmpi eq, %arg2, %c0_i32 : i32
    %1 = arith.extui %0 : i1 to i32
    %c0_i32_0 = arith.constant 0 : i32
    %2 = arith.cmpi ne, %1, %c0_i32_0 : i32
    scf.if %2 {
      %cst_10 = arith.constant 0.000000e+00 : f32
      %12 = vector.broadcast %cst_10 : f32 to vector<16x32xf32>
      %c0_11 = arith.constant 0 : index
      %c0_12 = arith.constant 0 : index
      %13 = vector.load %arg6[%c0_11, %c0_12] : memref<16x32xf32, #tpu.memory_space<vmem>>, vector<16x32xf32>
      tpu.vector_store %arg6[%c0_11, %c0_12], %12 {strides = array<i32>} : memref<16x32xf32, #tpu.memory_space<vmem>>, vector<16x32xf32>,
    } else {
    }
    %c0 = arith.constant 0 : index
    %c0_1 = arith.constant 0 : index
    %3 = vector.load %arg6[%c0, %c0_1] : memref<16x32xf32, #tpu.memory_space<vmem>>, vector<16x32xf32>
    %c0_2 = arith.constant 0 : index
    %c0_3 = arith.constant 0 : index
    %4 = vector.load %arg3[%c0_2, %c0_3] : memref<16x128xf32, #tpu.memory_space<vmem>>, vector<16x128xf32>
    %c0_4 = arith.constant 0 : index
    %c0_5 = arith.constant 0 : index
    %5 = vector.load %arg4[%c0_4, %c0_5] : memref<128x32xf32, #tpu.memory_space<vmem>>, vector<128x32xf32>
    %cst = arith.constant dense<0.000000e+00> : vector<16x32xf32>
    %6 = tpu.matmul %4, %5, %cst {dimension_numbers = #tpu.dot_dimension_numbers<[1], [0], [0], [1], [0, 0, 1, 1], [], []>} : vector<16x128xf32>, vector<128x32xf32>, vector<16x32xf32> -> vector<16x32xf32>
    %7 = arith.addf %3, %6 : vector<16x32xf32>
    %c0_6 = arith.constant 0 : index
    %c0_7 = arith.constant 0 : index
    %8 = vector.load %arg6[%c0_6, %c0_7] : memref<16x32xf32, #tpu.memory_space<vmem>>, vector<16x32xf32>
    tpu.vector_store %arg6[%c0_6, %c0_7], %7 {strides = array<i32>} : memref<16x32xf32, #tpu.memory_space<vmem>>, vector<16x32xf32>,
    %c0_i32_8 = arith.constant 0 : i32
    %9 = arith.cmpi eq, %arg2, %c0_i32_8 : i32
    %10 = arith.extui %9 : i1 to i32
    %c0_i32_9 = arith.constant 0 : i32
    %11 = arith.cmpi ne, %10, %c0_i32_9 : i32
    scf.if %11 {
      %c0_10 = arith.constant 0 : index
      %c0_11 = arith.constant 0 : index
      %12 = vector.load %arg6[%c0_10, %c0_11] : memref<16x32xf32, #tpu.memory_space<vmem>>, vector<16x32xf32>
      %c0_12 = arith.constant 0 : index
      %c0_13 = arith.constant 0 : index
      %13 = vector.load %arg5[%c0_12, %c0_13] : memref<16x32xf32, #tpu.memory_space<vmem>>, vector<16x32xf32>
      tpu.vector_store %arg5[%c0_12, %c0_13], %12 {strides = array<i32>} : memref<16x32xf32, #tpu.memory_space<vmem>>, vector<16x32xf32>,
    } else {
    }
    return
  }
  func.func @transform_0(%arg0: i32, %arg1: i32, %arg2: i32) -> (i32, i32) {
    %c0_i32 = arith.constant 0 : i32
    return %arg0, %arg2 : i32, i32
  }
  func.func @transform_1(%arg0: i32, %arg1: i32, %arg2: i32) -> (i32, i32) {
    %c0_i32 = arith.constant 0 : i32
    return %arg2, %arg1 : i32, i32
  }
  func.func @transform_2(%arg0: i32, %arg1: i32, %arg2: i32) -> (i32, i32) {
    %c0_i32 = arith.constant 0 : i32
    return %arg0, %arg1 : i32, i32
  }
}

</mosaic_0001>

<llo_original>
// kernel: _lambda_.7
$region0: #{_lambda_.7}
  #allocation0 [shape = 'u32[]', space=smem, size = 0x4, offset = 0x4, fixed_abs, tag = 'smem constant byte address 0x4 - core index']
  #allocation1 [shape = 'u32[144,128]{1,0:T(1,128)}', space=vmem, size = 0x12000, scoped, tag = 'internal scratch']
  %s0 = inlined_call_operand.hbm [shape: f32[16,32], index: 0, kind: input, shape index: {}]
  %s1 = inlined_call_operand.hbm [shape: f32[1,32], index: 1, kind: input, shape index: {}]
  %s2 = inlined_call_operand.hbm [shape: f32[16,32], index: 2, kind: output, shape index: {}]
  %s3 = sld [smem:[#allocation0]]
  $region26: #{_lambda_.7} parent=0
    _
  %s5 = ssub.s32 1, %s3
  %s6 = scalar_select 0, %s5, %s3
  $region1: #{_lambda_.7} parent=0
    #allocation2 [shape = 'u8[8192]{0}', space=vmem, size = 0x2000, scoped, tag = 'input window, operand 0, single buffered']
    #allocation3 [shape = 's32[1]{0}', space=sflag, size = 0x4, scoped, tag = 'scoped memory for _lambda_.7']
    #allocation4 [shape = 's32[1]{0}', space=sflag, size = 0x4, scoped, tag = 'scoped memory for _lambda_.7']
    #allocation5 [shape = 'u8[512]{0}', space=vmem, size = 0x400, scoped, tag = 'input window, operand 1, single buffered']
    #allocation6 [shape = 's32[1]{0}', space=sflag, size = 0x4, scoped, tag = 'scoped memory for _lambda_.7']
    #allocation7 [shape = 'u8[8192]{0}', space=vmem, size = 0x2000, scoped, tag = 'output window, operand 0, single buffered']
    %7 = vsyncpa [#allocation3], 0
    %8 = vsyncpa [#allocation6], 0
    %9 = vsyncpa [#allocation4], 0
    // Predicated region
    $region2: #{_lambda_.7} parent=1 // pred_check
      _
    $region3: #{_lambda_.7} parent=1 // pred_check_branch
      %11 = sbr.rel (0) target = $region5
    $region4: #{_lambda_.7} parent=1 // pred_region
      %s13 = ssub.s32 256, 256
      %14 = vsyncadd [#allocation3], %s13
      %s15 = sshll.u32 [#allocation2], 4
      %s16 = int_to_ptr.vmem [resolvable:$true] %s15
      %21 = dma.hbm_to_vmem [thread:$0]  %s0, 256, %s16, [#allocation3], 128, 128, 8
    $region5: #{_lambda_.7} parent=1 // pred_fallthru
      _
    // Predicated region
    $region6: #{_lambda_.7} parent=1 // pred_check
      _
    $region7: #{_lambda_.7} parent=1 // pred_check_branch
      %23 = sbr.rel (0) target = $region9
    $region8: #{_lambda_.7} parent=1 // pred_region
      %s25 = ssub.s32 16, 16
      %26 = vsyncadd [#allocation6], %s25
      %s28 = sshll.u32 [#allocation5], 4
      %s29 = int_to_ptr.vmem [resolvable:$true] %s28
      %31 = dma.hbm_to_vmem [thread:$0]  %s1, 16, %s29, [#allocation6]
    $region9: #{_lambda_.7} parent=1 // pred_fallthru
      _
    // Predicated region
    $region10: #{_lambda_.7} parent=1 // pred_check
      _
    $region11: #{_lambda_.7} parent=1 // pred_check_branch
      %33 = sbr.rel (0) target = $region13
    $region12: #{_lambda_.7} parent=1 // pred_region
      %34 = dma.done [#allocation3], 256
    $region13: #{_lambda_.7} parent=1 // pred_fallthru
      _
    // Predicated region
    $region14: #{_lambda_.7} parent=1 // pred_check
      _
    $region15: #{_lambda_.7} parent=1 // pred_check_branch
      %36 = sbr.rel (0) target = $region17
    $region16: #{_lambda_.7} parent=1 // pred_region
      %37 = dma.done [#allocation6], 16
    $region17: #{_lambda_.7} parent=1 // pred_fallthru
      _
    %v38 = vld [vmem:[#allocation2] sm:$0xff]
    %v39 = vld [vmem:[#allocation2 + $0x8] sm:$0xff]
    %vm40 = vcmask 261120
    %v41 = vsel %vm40, %v38, 0.0
    %42 = vadd.xlane.f32.xlu0 %v41
    %v43 = vpop.xlane.xlu0 %42
    %v44 = vsel %vm40, %v39, 0.0
    %45 = vadd.xlane.f32.xlu0 %v44
    %v46 = vpop.xlane.xlu0 %45
    %v47 = vmul.f32 %v43, 0.03125
    %v48 = vmul.f32 %v46, 0.03125
    %v49 = vmul.f32 %v38, %v38
    %v50 = vmul.f32 %v39, %v39
    %v51 = vsel %vm40, %v49, 0.0
    %52 = vadd.xlane.f32.xlu0 %v51
    %v53 = vpop.xlane.xlu0 %52
    %v54 = vsel %vm40, %v50, 0.0
    %55 = vadd.xlane.f32.xlu0 %v54
    %v56 = vpop.xlane.xlu0 %55
    %v57 = vmul.f32 %v53, 0.03125
    %v58 = vmul.f32 %v56, 0.03125
    %v59 = vmul.f32 %v47, %v47
    %v60 = vmul.f32 %v48, %v48
    %v61 = vsub.f32 %v57, %v59
    %v62 = vsub.f32 %v58, %v60
    %v63 = vmax.f32 %v61, 0.0
    %v64 = vmax.f32 %v62, 0.0
    %v65 = vadd.f32 %v63, 1e-05
    %v66 = vadd.f32 %v64, 1e-05
    %v67 = vrsqrt.pop %v65
    %v68 = vrsqrt.pop %v66
    %v69 = vsub.f32 %v38, %v47
    %v70 = vsub.f32 %v39, %v48
    %v71 = vmul.f32 %v69, %v67
    %v72 = vmul.f32 %v70, %v68
    %v73 = vld [vmem:[#allocation5] sm:$0x1]
    %v75 = vlaneseq
    %v76 = vshrl.u32 %v75, 7
    %v77 = vsub.s32 0, %v76
    %v78 = vrot.slane %v73, %v77
    %v80 = vmul.f32 %v71, %v78
    %v81 = vmul.f32 %v72, %v78
    %82 = vst.msk [vmem:[#allocation7] sm:$0xff] %vm40, %v80
    %83 = vst.msk [vmem:[#allocation7 + $0x8] sm:$0xff] %vm40, %v81
    // Predicated region
    $region18: #{_lambda_.7} parent=1 // pred_check
      _
    $region19: #{_lambda_.7} parent=1 // pred_check_branch
      %85 = sbr.rel (0) target = $region21
    $region20: #{_lambda_.7} parent=1 // pred_region
      %s87 = ssub.s32 256, 256
      %88 = vsyncadd [#allocation4], %s87
      %s89 = sshll.u32 [#allocation7], 4
      %s90 = int_to_ptr.vmem [resolvable:$true] %s89
      %95 = dma.vmem_to_hbm [thread:$0]  %s90, 256, %s2, [#allocation4], 128, 128, 8
    $region21: #{_lambda_.7} parent=1 // pred_fallthru
      _
    // Predicated region
    $region22: #{_lambda_.7} parent=1 // pred_check
      _
    $region23: #{_lambda_.7} parent=1 // pred_check_branch
      %97 = sbr.rel (0) target = $region25
    $region24: #{_lambda_.7} parent=1 // pred_region
      %98 = dma.done [#allocation4], 256
    $region25: #{_lambda_.7} parent=1 // pred_fallthru
      _
    %99 = vsyncpa [#allocation3], 1
    %100 = vsyncpa [#allocation6], 1
    %101 = vsyncpa [#allocation4], 1

// kernel: _lambda_.8
$region0: #{_lambda_.8}
  #allocation0 [shape = 'u32[]', space=smem, size = 0x4, offset = 0x4, fixed_abs, tag = 'smem constant byte address 0x4 - core index']
  #allocation1 [shape = 'u32[144,128]{1,0:T(1,128)}', space=vmem, size = 0x12000, scoped, tag = 'internal scratch']
  #allocation2 [shape = 'f32[16,96]{1,0:T(8,128)}', space=vmem, size = 0x2000, scoped, tag = 'scratch operand']
  %s0 = inlined_call_operand.hbm [shape: f32[16,32], index: 0, kind: input, shape index: {}]
  %s1 = inlined_call_operand.hbm [shape: f32[32,96], index: 1, kind: input, shape index: {}]
  %s2 = inlined_call_operand.hbm [shape: f32[16,96], index: 2, kind: output, shape index: {}]
  %s3 = sld [smem:[#allocation0]]
  $region34: #{_lambda_.8} parent=0
    _
  %s5 = ssub.s32 1, %s3
  %s6 = scalar_select 0, %s5, %s3
  $region1: #{_lambda_.8} parent=0
    #allocation3 [shape = 'u8[8192]{0}', space=vmem, size = 0x2000, scoped, tag = 'input window, operand 0, single buffered']
    #allocation4 [shape = 's32[1]{0}', space=sflag, size = 0x4, scoped, tag = 'scoped memory for _lambda_.8']
    #allocation5 [shape = 's32[1]{0}', space=sflag, size = 0x4, scoped, tag = 'scoped memory for _lambda_.8']
    #allocation6 [shape = 'u8[16384]{0}', space=vmem, size = 0x4000, scoped, tag = 'input window, operand 1, single buffered']
    #allocation7 [shape = 's32[1]{0}', space=sflag, size = 0x4, scoped, tag = 'scoped memory for _lambda_.8']
    #allocation8 [shape = 'u8[8192]{0}', space=vmem, size = 0x2000, scoped, tag = 'output window, operand 0, single buffered']
    %7 = vsyncpa [#allocation4], 0
    %8 = vsyncpa [#allocation7], 0
    %9 = vsyncpa [#allocation5], 0
    // Predicated region
    $region2: #{_lambda_.8} parent=1 // pred_check
      _
    $region3: #{_lambda_.8} parent=1 // pred_check_branch
      %11 = sbr.rel (0) target = $region5
    $region4: #{_lambda_.8} parent=1 // pred_region
      %s13 = ssub.s32 256, 256
      %14 = vsyncadd [#allocation4], %s13
      %s15 = sshll.u32 [#allocation3], 4
      %s16 = int_to_ptr.vmem [resolvable:$true] %s15
      %21 = dma.hbm_to_vmem [thread:$0]  %s0, 256, %s16, [#allocation4], 128, 128, 8
    $region5: #{_lambda_.8} parent=1 // pred_fallthru
      _
    // Predicated region
    $region6: #{_lambda_.8} parent=1 // pred_check
      _
    $region7: #{_lambda_.8} parent=1 // pred_check_branch
      %23 = sbr.rel (0) target = $region9
    $region8: #{_lambda_.8} parent=1 // pred_region
      %s25 = ssub.s32 512, 512
      %26 = vsyncadd [#allocation7], %s25
      %s27 = sshll.u32 [#allocation6], 4
      %s28 = int_to_ptr.vmem [resolvable:$true] %s27
      %33 = dma.hbm_to_vmem [thread:$0]  %s1, 512, %s28, [#allocation7], 128, 128, 8
    $region9: #{_lambda_.8} parent=1 // pred_fallthru
      _
    // Predicated region
    $region10: #{_lambda_.8} parent=1 // pred_check
      _
    $region11: #{_lambda_.8} parent=1 // pred_check_branch
      %35 = sbr.rel (0) target = $region13
    $region12: #{_lambda_.8} parent=1 // pred_region
      %36 = dma.done [#allocation4], 256
    $region13: #{_lambda_.8} parent=1 // pred_fallthru
      _
    // Predicated region
    $region14: #{_lambda_.8} parent=1 // pred_check
      _
    $region15: #{_lambda_.8} parent=1 // pred_check_branch
      %38 = sbr.rel (0) target = $region17
    $region16: #{_lambda_.8} parent=1 // pred_region
      %39 = dma.done [#allocation7], 512
    $region17: #{_lambda_.8} parent=1 // pred_fallthru
      _
    %p40 = scmp.eq.s32.totalorder 0, 0
    // Predicated region
    $region18: #{_lambda_.8} parent=1 // pred_check
      %p41 = pneg %p40
    $region19: #{_lambda_.8} parent=1 // pred_check_branch
      %43 = sbr.rel (%p41) target = $region21
    $region20: #{_lambda_.8} parent=1 // pred_region
      %vm44 = vcmask 785408
      %45 = vst.msk [vmem:[#allocation2] sm:$0xff] %vm44, 0.0
      %46 = vst.msk [vmem:[#allocation2 + $0x8] sm:$0xff] %vm44, 0.0
    $region21: #{_lambda_.8} parent=1 // pred_fallthru
      _
    %v47 = vld [vmem:[#allocation2] sm:$0xff]
    %v48 = vld [vmem:[#allocation2 + $0x8] sm:$0xff]
    %v49 = vld [vmem:[#allocation3] sm:$0xff]
    %v50 = vld [vmem:[#allocation3 + $0x8] sm:$0xff]
    %v51 = vld [vmem:[#allocation6] sm:$0xff]
    %v52 = vld [vmem:[#allocation6 + $0x8] sm:$0xff]
    %v53 = vld [vmem:[#allocation6 + $0x10] sm:$0xff]
    %v54 = vld [vmem:[#allocation6 + $0x18] sm:$0xff]
    %vm55 = vcmask 261120
    %v57 = vsel %vm55, %v49, 0
    %v60 = vsel %vm55, %v50, 0
    %62 = vmatprep.subr.mxu0 0.0
    %63 = vmatpush1.msra.mxu0 %v51
    %64 = vmatprep.subr.mxu0 0.0
    %65 = vmatpush1.msra.mxu0 %v52
    %66 = vmatprep.subr.mxu0 0.0
    %67 = vmatpush1.msra.mxu0 %v53
    %68 = vmatprep.subr.mxu0 0.0
    %69 = vmatpush1.msra.mxu0 %v54
    %70 = vmatprep.subr.mxu0 0.0
    %71 = vmatpush1.msra.mxu0 0.0
    %72 = vmatprep.subr.mxu0 0.0
    %73 = vmatpush1.msra.mxu0 0.0
    %74 = vmatprep.subr.mxu0 0.0
    %75 = vmatpush1.msra.mxu0 0.0
    %76 = vmatprep.subr.mxu0 0.0
    %77 = vmatpush1.msra.mxu0 0.0
    %78 = vmatprep.subr.mxu0 0.0
    %79 = vmatpush1.msra.mxu0 0.0
    %80 = vmatprep.subr.mxu0 0.0
    %81 = vmatpush1.msra.mxu0 0.0
    %82 = vmatprep.subr.mxu0 0.0
    %83 = vmatpush1.msra.mxu0 0.0
    %84 = vmatprep.subr.mxu0 0.0
    %85 = vmatpush1.msra.mxu0 0.0
    %86 = vmatprep.subr.mxu0 0.0
    %87 = vmatpush1.msra.mxu0 0.0
    %88 = vmatprep.subr.mxu0 0.0
    %89 = vmatpush1.msra.mxu0 0.0
    %90 = vmatprep.subr.mxu0 0.0
    %91 = vmatpush1.msra.mxu0 0.0
    %92 = vmatprep.subr.mxu0 0.0
    %93 = vmatpush1.msra.mxu0 0.0
    %94 = vmatprep.subr.mxu0 0.0
    %95 = vmatpush1.msra.mxu0 0.0
    %96 = vmatprep.subr.mxu0 0.0
    %97 = vmatpush1.msra.mxu0 0.0
    %98 = vmatprep.subr.mxu0 0.0
    %99 = vmatpush1.msra.mxu0 0.0
    %100 = vmatprep.subr.mxu0 0.0
    %101 = vmatpush1.msra.mxu0 0.0
    %102 = vmatprep.subr.mxu0 0.0
    %103 = vmatpush1.msra.mxu0 0.0
    %104 = vmatprep.subr.mxu0 0.0
    %105 = vmatpush1.msra.mxu0 0.0
    %106 = vmatprep.subr.mxu0 0.0
    %107 = vmatpush1.msra.mxu0 0.0
    %108 = vmatprep.subr.mxu0 0.0
    %109 = vmatpush1.msra.mxu0 0.0
    %110 = vmatprep.subr.mxu0 0.0
    %111 = vmatpush1.msra.mxu0 0.0
    %112 = vmatprep.subr.mxu0 0.0
    %113 = vmatpush1.msra.mxu0 0.0
    %114 = vmatprep.subr.mxu0 0.0
    %115 = vmatpush1.msra.mxu0 0.0
    %116 = vmatprep.subr.mxu0 0.0
    %117 = vmatpush1.msra.mxu0 0.0
    %118 = vmatprep.subr.mxu0 0.0
    %119 = vmatpush1.msra.mxu0 0.0
    %120 = vmatprep.subr.mxu0 0.0
    %121 = vmatpush1.msra.mxu0 0.0
    %122 = vmatprep.subr.mxu0 0.0
    %123 = vmatpush1.msra.mxu0 0.0
    %124 = vmatprep.subr.mxu0 0.0
    %125 = vmatpush1.msra.mxu0 0.0
    %126 = vmatprep.mubr.f32.mxu0 0.0
    %127 = vmatmul.mubr.f32.gmra.mrb[0].mxu0 %v57
    %v128 = vpop.f32.mrb[0].mxu0
    %v129 = vadd.f32 0.0, %v128
    %v130 = vpop.f32.mrb[0].mxu0
    %131 = vmatprep.mubr.f32.mxu0 0.0
    %132 = vmatmul.mubr.f32.gmra.mrb[0].mxu0 %v60
    %v133 = vpop.f32.mrb[0].mxu0
    %v134 = vadd.f32 0.0, %v133
    %v135 = vpop.f32.mrb[0].mxu0
    %136 = vdwg.mxu0
    %v137 = vadd.f32 %v47, %v129
    %v138 = vadd.f32 %v48, %v134
    %vm139 = vcmask 785408
    %140 = vst.msk [vmem:[#allocation2] sm:$0xff] %vm139, %v137
    %141 = vst.msk [vmem:[#allocation2 + $0x8] sm:$0xff] %vm139, %v138
    // Predicated region
    $region22: #{_lambda_.8} parent=1 // pred_check
      %p142 = pneg %p40
    $region23: #{_lambda_.8} parent=1 // pred_check_branch
      %144 = sbr.rel (%p142) target = $region25
    $region24: #{_lambda_.8} parent=1 // pred_region
      %v145 = vld [vmem:[#allocation2] sm:$0xff]
      %v146 = vld [vmem:[#allocation2 + $0x8] sm:$0xff]
      %147 = vst.msk [vmem:[#allocation8] sm:$0xff] %vm139, %v145
      %148 = vst.msk [vmem:[#allocation8 + $0x8] sm:$0xff] %vm139, %v146
    $region25: #{_lambda_.8} parent=1 // pred_fallthru
      _
    // Predicated region
    $region26: #{_lambda_.8} parent=1 // pred_check
      _
    $region27: #{_lambda_.8} parent=1 // pred_check_branch
      %150 = sbr.rel (0) target = $region29
    $region28: #{_lambda_.8} parent=1 // pred_region
      %s152 = ssub.s32 256, 256
      %153 = vsyncadd [#allocation5], %s152
      %s154 = sshll.u32 [#allocation8], 4
      %s155 = int_to_ptr.vmem [resolvable:$true] %s154
      %160 = dma.vmem_to_hbm [thread:$0]  %s155, 256, %s2, [#allocation5], 128, 128, 8
    $region29: #{_lambda_.8} parent=1 // pred_fallthru
      _
    // Predicated region
    $region30: #{_lambda_.8} parent=1 // pred_check
      _
    $region31: #{_lambda_.8} parent=1 // pred_check_branch
      %162 = sbr.rel (0) target = $region33
    $region32: #{_lambda_.8} parent=1 // pred_region
      %163 = dma.done [#allocation5], 256
    $region33: #{_lambda_.8} parent=1 // pred_fallthru
      _
    %164 = vsyncpa [#allocation4], 1
    %165 = vsyncpa [#allocation7], 1
    %166 = vsyncpa [#allocation5], 1

// kernel: _lambda_.9
$region0: #{_lambda_.9}
  #allocation0 [shape = 'u32[]', space=smem, size = 0x4, offset = 0x4, fixed_abs, tag = 'smem constant byte address 0x4 - core index']
  #allocation1 [shape = 'u32[144,128]{1,0:T(1,128)}', space=vmem, size = 0x12000, scoped, tag = 'internal scratch']
  %s0 = inlined_call_operand.hbm [shape: f32[8,8,8], index: 0, kind: input, shape index: {}]
  %s1 = inlined_call_operand.hbm [shape: f32[8,8,8], index: 1, kind: input, shape index: {}]
  %s2 = inlined_call_operand.hbm [shape: f32[8,8,8], index: 2, kind: input, shape index: {}]
  %s3 = inlined_call_operand.hbm [shape: f32[8,8,8], index: 3, kind: output, shape index: {}]
  %s4 = sld [smem:[#allocation0]]
  $region57: #{_lambda_.9} parent=0
    _
  %s6 = ssub.s32 1, %s4
  %s7 = scalar_select 0, %s6, %s4
  $region1: #{_lambda_.9} parent=0
    #allocation2 [shape = 'u8[8192]{0}', space=vmem, size = 0x2000, scoped, tag = 'input window, operand 0']
    #allocation3 [shape = 's32[2]{0}', space=sflag, size = 0x8, scoped, tag = 'scoped memory for _lambda_.9']
    #allocation4 [shape = 's32[2]{0}', space=sflag, size = 0x8, scoped, tag = 'scoped memory for _lambda_.9']
    #allocation5 [shape = 'u8[8192]{0}', space=vmem, size = 0x2000, scoped, tag = 'input window, operand 1']
    #allocation6 [shape = 's32[2]{0}', space=sflag, size = 0x8, scoped, tag = 'scoped memory for _lambda_.9']
    #allocation7 [shape = 'u8[8192]{0}', space=vmem, size = 0x2000, scoped, tag = 'input window, operand 2']
    #allocation8 [shape = 'u8[8192]{0}', space=vmem, size = 0x2000, scoped, tag = 'output window, operand 0']
    %8 = vsyncpa [#allocation3], 0
    %s9 = scalar_lea.sflag [#allocation3], 1
    %10 = vsyncpa %s9, 0
    %11 = vsyncpa [#allocation6], 0
    %s12 = scalar_lea.sflag [#allocation6], 1
    %13 = vsyncpa %s12, 0
    %14 = vsyncpa [#allocation4], 0
    %s15 = scalar_lea.sflag [#allocation4], 1
    %16 = vsyncpa %s15, 0
    loop: start=0, step=1, limit=10
    $region2: #{_lambda_.9} parent=1 // loop_pre_header
      _
    $region3: #{_lambda_.9} parent=1 // loop_header
      %s18 = sphi 0, %s22
      %p19 = scmp.ge.s32.totalorder %s18, 10
      %s28 = sphi 0, %s30
      %s31 = sphi 0, %s28
      %s32 = sphi 0, %s31
      %s48 = sphi 0, %s32
      %s54 = sphi 0, %s56
      %s57 = sphi 0, %s54
      %s58 = sphi 0, %s57
      %s74 = sphi 0, %s58
      %s80 = sphi 0, %s82
      %s83 = sphi 0, %s80
      %s84 = sphi 0, %s83
      %s100 = sphi 0, %s84
      %s106 = sphi 0, %s108
      %s109 = sphi 0, %s106
      %s110 = sphi 0, %s109
      %s126 = sphi 0, %s110
    $region4: #{_lambda_.9} parent=1 // loop_header_branch
      %21 = sbr.rel (%p19) target = $region8
    $region5: #{_lambda_.9} parent=1 // loop_body
      %s23 = ssub.s32 %s18, 1
      %s24 = ssub.s32 %s18, 2
      %s25 = sadd.s32 %s18, 1
      %s26 = ssub.s32 %s18, %s25
      %p27 = scmp.eq.s32.totalorder %s26, 0
      %s29 = sadd.s32 %s28, 1
      %s30 = scalar_select %p27, %s28, %s29
      %p33 = pneg %p27
      %p34 = scmp.eq.s32.totalorder %s18, 7
      %p35 = por %p33, %p34
      %p36 = scmp.ne.s32.totalorder %s28, %s31
      %p37 = scmp.eq.s32.totalorder %s18, 0
      %p38 = por %p36, %p37
      %p39 = scmp.ne.s32.totalorder %s28, %s31
      %p40 = scmp.eq.s32.totalorder %s23, 7
      %p41 = por %p39, %p40
      %p42 = scmp.ne.s32.totalorder %s31, %s32
      %p43 = scmp.eq.s32.totalorder %s23, 0
      %p44 = por %p42, %p43
      %p45 = scmp.ne.s32.totalorder %s31, %s32
      %p46 = scmp.eq.s32.totalorder %s24, 7
      %p47 = por %p45, %p46
      %p49 = scmp.ne.s32.totalorder %s32, %s48
      %p50 = scmp.eq.s32.totalorder %s24, 0
      %p51 = por %p49, %p50
      %s52 = ssub.s32 %s18, %s25
      %p53 = scmp.eq.s32.totalorder %s52, 0
      %s55 = sadd.s32 %s54, 1
      %s56 = scalar_select %p53, %s54, %s55
      %p59 = pneg %p53
      %p60 = scmp.eq.s32.totalorder %s18, 7
      %p61 = por %p59, %p60
      %p62 = scmp.ne.s32.totalorder %s54, %s57
      %p63 = scmp.eq.s32.totalorder %s18, 0
      %p64 = por %p62, %p63
      %p65 = scmp.ne.s32.totalorder %s54, %s57
      %p66 = scmp.eq.s32.totalorder %s23, 7
      %p67 = por %p65, %p66
      %p68 = scmp.ne.s32.totalorder %s57, %s58
      %p69 = scmp.eq.s32.totalorder %s23, 0
      %p70 = por %p68, %p69
      %p71 = scmp.ne.s32.totalorder %s57, %s58
      %p72 = scmp.eq.s32.totalorder %s24, 7
      %p73 = por %p71, %p72
      %p75 = scmp.ne.s32.totalorder %s58, %s74
      %p76 = scmp.eq.s32.totalorder %s24, 0
      %p77 = por %p75, %p76
      %s78 = ssub.s32 %s18, %s25
      %p79 = scmp.eq.s32.totalorder %s78, 0
      %s81 = sadd.s32 %s80, 1
      %s82 = scalar_select %p79, %s80, %s81
      %p85 = pneg %p79
      %p86 = scmp.eq.s32.totalorder %s18, 7
      %p87 = por %p85, %p86
      %p88 = scmp.ne.s32.totalorder %s80, %s83
      %p89 = scmp.eq.s32.totalorder %s18, 0
      %p90 = por %p88, %p89
      %p91 = scmp.ne.s32.totalorder %s80, %s83
      %p92 = scmp.eq.s32.totalorder %s23, 7
      %p93 = por %p91, %p92
      %p94 = scmp.ne.s32.totalorder %s83, %s84
      %p95 = scmp.eq.s32.totalorder %s23, 0
      %p96 = por %p94, %p95
      %p97 = scmp.ne.s32.totalorder %s83, %s84
      %p98 = scmp.eq.s32.totalorder %s24, 7
      %p99 = por %p97, %p98
      %p101 = scmp.ne.s32.totalorder %s84, %s100
      %p102 = scmp.eq.s32.totalorder %s24, 0
      %p103 = por %p101, %p102
      %s104 = ssub.s32 %s18, %s25
      %p105 = scmp.eq.s32.totalorder %s104, 0
      %s107 = sadd.s32 %s106, 1
      %s108 = scalar_select %p105, %s106, %s107
      %p111 = pneg %p105
      %p112 = scmp.eq.s32.totalorder %s18, 7
      %p113 = por %p111, %p112
      %p114 = scmp.ne.s32.totalorder %s106, %s109
      %p115 = scmp.eq.s32.totalorder %s18, 0
      %p116 = por %p114, %p115
      %p117 = scmp.ne.s32.totalorder %s106, %s109
      %p118 = scmp.eq.s32.totalorder %s23, 7
      %p119 = por %p117, %p118
      %p120 = scmp.ne.s32.totalorder %s109, %s110
      %p121 = scmp.eq.s32.totalorder %s23, 0
      %p122 = por %p120, %p121
      %p123 = scmp.ne.s32.totalorder %s109, %s110
      %p124 = scmp.eq.s32.totalorder %s24, 7
      %p125 = por %p123, %p124
      %p127 = scmp.ne.s32.totalorder %s110, %s126
      %p128 = scmp.eq.s32.totalorder %s24, 0
      %p129 = por %p127, %p128
      %p130 = scmp.le.s32.totalorder 1, %s18
      %p131 = scmp.lt.s32.totalorder %s18, 9
      %p132 = pnand %p130, %p131
      %p133 = pneg %p132
      // Predicated region
      $region9: #{_lambda_.9} parent=5 // pred_check
        _
      $region10: #{_lambda_.9} parent=5 // pred_check_branch
        %135 = sbr.rel (%p132) target = $region12
      $region11: #{_lambda_.9} parent=5 // pred_region
        %s136 = ssub.s32 %s18, 1
      $region12: #{_lambda_.9} parent=5 // pred_fallthru
        _
      %p137 = scmp.lt.s32.totalorder %s18, 8
      // Predicated region
      $region13: #{_lambda_.9} parent=5 // pred_check
        %p138 = pneg %p137
      $region14: #{_lambda_.9} parent=5 // pred_check_branch
        %140 = sbr.rel (%p138) target = $region16
      $region15: #{_lambda_.9} parent=5 // pred_region
        // Predicated region
        $region17: #{_lambda_.9} parent=15 // pred_check
          %p141 = pneg %p38
        $region18: #{_lambda_.9} parent=15 // pred_check_branch
          %143 = sbr.rel (%p141) target = $region20
        $region19: #{_lambda_.9} parent=15 // pred_region
          %s144 = sand.u32 %s28, 1
          %s145 = scalar_lea.sflag [#allocation3], %s144
          %s146 = sand.u32 %s28, 1
          %s147 = smul.addr %s146, 8
          %s148 = scalar_lea.vmem [#allocation2], %s147
          %s150 = ssub.s32 128, 128
          %151 = vsyncadd %s145, %s150
          %s152 = smul.addr %s18, 128
          %s153 = scalar_lea.hbm %s0, %s152
          %s155 = sshll.u32 %s148, 4
          %s156 = int_to_ptr.vmem [resolvable:$true] %s155
          %158 = dma.hbm_to_vmem [thread:$0]  %s153, 128, %s156, %s145
        $region20: #{_lambda_.9} parent=15 // pred_fallthru
          _
        // Predicated region
        $region21: #{_lambda_.9} parent=15 // pred_check
          %p159 = pneg %p64
        $region22: #{_lambda_.9} parent=15 // pred_check_branch
          %161 = sbr.rel (%p159) target = $region24
        $region23: #{_lambda_.9} parent=15 // pred_region
          %s162 = sand.u32 %s18, 1
          %s163 = scalar_lea.sflag [#allocation6], %s162
          %s164 = sand.u32 %s54, 1
          %s165 = smul.addr %s164, 8
          %s166 = scalar_lea.vmem [#allocation5], %s165
          %s168 = ssub.s32 128, 128
          %169 = vsyncadd %s163, %s168
          %s170 = smul.addr %s18, 128
          %s171 = scalar_lea.hbm %s1, %s170
          %s173 = sshll.u32 %s166, 4
          %s174 = int_to_ptr.vmem [resolvable:$true] %s173
          %176 = dma.hbm_to_vmem [thread:$0]  %s171, 128, %s174, %s163
        $region24: #{_lambda_.9} parent=15 // pred_fallthru
          _
        // Predicated region
        $region25: #{_lambda_.9} parent=15 // pred_check
          %p177 = pneg %p90
        $region26: #{_lambda_.9} parent=15 // pred_check_branch
          %179 = sbr.rel (%p177) target = $region28
        $region27: #{_lambda_.9} parent=15 // pred_region
          %s180 = sand.u32 %s18, 1
          %s181 = scalar_lea.sflag [#allocation6], %s180
          %s182 = sand.u32 %s80, 1
          %s183 = smul.addr %s182, 8
          %s184 = scalar_lea.vmem [#allocation7], %s183
          %s186 = ssub.s32 128, 128
          %187 = vsyncadd %s181, %s186
          %s188 = smul.addr %s18, 128
          %s189 = scalar_lea.hbm %s2, %s188
          %s191 = sshll.u32 %s184, 4
          %s192 = int_to_ptr.vmem [resolvable:$true] %s191
          %194 = dma.hbm_to_vmem [thread:$0]  %s189, 128, %s192, %s181
        $region28: #{_lambda_.9} parent=15 // pred_fallthru
          _
      $region16: #{_lambda_.9} parent=5 // pred_fallthru
        _
      %p195 = scmp.le.s32.totalorder 1, %s18
      %p196 = scmp.lt.s32.totalorder %s18, 9
      %p197 = pnand %p195, %p196
      %p198 = pneg %p197
      // Predicated region
      $region29: #{_lambda_.9} parent=5 // pred_check
        _
      $region30: #{_lambda_.9} parent=5 // pred_check_branch
        %200 = sbr.rel (%p197) target = $region32
      $region31: #{_lambda_.9} parent=5 // pred_region
        %s201 = ssub.s32 %s18, 1
        %s202 = sand.u32 %s31, 1
        %s203 = scalar_lea.sflag [#allocation3], %s202
        %s204 = sand.u32 %s31, 1
        %s205 = smul.addr %s204, 8
        %s206 = scalar_lea.vmem [#allocation2], %s205
        // Predicated region
        $region33: #{_lambda_.9} parent=31 // pred_check
          %p207 = pneg %p44
        $region34: #{_lambda_.9} parent=31 // pred_check_branch
          %209 = sbr.rel (%p207) target = $region36
        $region35: #{_lambda_.9} parent=31 // pred_region
          %210 = dma.done %s203, 128
        $region36: #{_lambda_.9} parent=31 // pred_fallthru
          _
        %s211 = sand.u32 %s23, 1
        %s212 = scalar_lea.sflag [#allocation6], %s211
        %s213 = sand.u32 %s57, 1
        %s214 = smul.addr %s213, 8
        %s215 = scalar_lea.vmem [#allocation5], %s214
        // Predicated region
        $region37: #{_lambda_.9} parent=31 // pred_check
          %p216 = pneg %p70
        $region38: #{_lambda_.9} parent=31 // pred_check_branch
          %218 = sbr.rel (%p216) target = $region40
        $region39: #{_lambda_.9} parent=31 // pred_region
          %219 = dma.done %s212, 128
        $region40: #{_lambda_.9} parent=31 // pred_fallthru
          _
        %s220 = sand.u32 %s23, 1
        %s221 = scalar_lea.sflag [#allocation6], %s220
        %s222 = sand.u32 %s83, 1
        %s223 = smul.addr %s222, 8
        %s224 = scalar_lea.vmem [#allocation7], %s223
        // Predicated region
        $region41: #{_lambda_.9} parent=31 // pred_check
          %p225 = pneg %p96
        $region42: #{_lambda_.9} parent=31 // pred_check_branch
          %227 = sbr.rel (%p225) target = $region44
        $region43: #{_lambda_.9} parent=31 // pred_region
          %228 = dma.done %s221, 128
        $region44: #{_lambda_.9} parent=31 // pred_fallthru
          _
        %s229 = sand.u32 %s31, 1
        %s230 = scalar_lea.sflag [#allocation3], %s229
        %s231 = sand.u32 %s31, 1
        %s232 = smul.addr %s231, 8
        %s233 = scalar_lea.vmem [#allocation2], %s232
        %p234 = pneg %p44
        %p235 = pneg %p41
        %s236 = sand.u32 %s23, 1
        %s237 = scalar_lea.sflag [#allocation6], %s236
        %s238 = sand.u32 %s57, 1
        %s239 = smul.addr %s238, 8
        %s240 = scalar_lea.vmem [#allocation5], %s239
        %p241 = pneg %p70
        %p242 = pneg %p67
        %s243 = sand.u32 %s23, 1
        %s244 = scalar_lea.sflag [#allocation6], %s243
        %s245 = sand.u32 %s83, 1
        %s246 = smul.addr %s245, 8
        %s247 = scalar_lea.vmem [#allocation7], %s246
        %p248 = pneg %p96
        %p249 = pneg %p93
        %p250 = pneg %p122
        %p251 = pneg %p119
        %s252 = sand.u32 %s109, 1
        %s253 = scalar_lea.sflag [#allocation4], %s252
        %s254 = sand.u32 %s109, 1
        %s255 = smul.addr %s254, 8
        %s256 = scalar_lea.vmem [#allocation8], %s255
        %v257 = vld [vmem:[%s206] sm:$0xff]
        %v258 = vld [vmem:[%s215] sm:$0xff]
        %v259 = vld [vmem:[%s224] sm:$0xff]
        %vm260 = vcmask 64512
        %v262 = vsel %vm260, %v257, 0
        %v265 = vsel %vm260, %v258, 0
        %267 = vmatprep.subr.mxu0 0.0
        %268 = vmatpush1.xpose.msra.mxu0 %v265
        %269 = vmatprep.subr.mxu0 0.0
        %270 = vmatpush1.xpose.msra.mxu0 0.0
        %271 = vmatprep.subr.mxu0 0.0
        %272 = vmatpush1.xpose.msra.mxu0 0.0
        %273 = vmatprep.subr.mxu0 0.0
        %274 = vmatpush1.xpose.msra.mxu0 0.0
        %275 = vmatprep.subr.mxu0 0.0
        %276 = vmatpush1.xpose.msra.mxu0 0.0
        %277 = vmatprep.subr.mxu0 0.0
        %278 = vmatpush1.xpose.msra.mxu0 0.0
        %279 = vmatprep.subr.mxu0 0.0
        %280 = vmatpush1.xpose.msra.mxu0 0.0
        %281 = vmatprep.subr.mxu0 0.0
        %282 = vmatpush1.xpose.msra.mxu0 0.0
        %283 = vmatprep.subr.mxu0 0.0
        %284 = vmatpush1.xpose.msra.mxu0 0.0
        %285 = vmatprep.subr.mxu0 0.0
        %286 = vmatpush1.xpose.msra.mxu0 0.0
        %287 = vmatprep.subr.mxu0 0.0
        %288 = vmatpush1.xpose.msra.mxu0 0.0
        %289 = vmatprep.subr.mxu0 0.0
        %290 = vmatpush1.xpose.msra.mxu0 0.0
        %291 = vmatprep.subr.mxu0 0.0
        %292 = vmatpush1.xpose.msra.mxu0 0.0
        %293 = vmatprep.subr.mxu0 0.0
        %294 = vmatpush1.xpose.msra.mxu0 0.0
        %295 = vmatprep.subr.mxu0 0.0
        %296 = vmatpush1.xpose.msra.mxu0 0.0
        %297 = vmatprep.subr.mxu0 0.0
        %298 = vmatpush1.xpose.msra.mxu0 0.0
        %299 = vmatprep.subr.mxu0 0.0
        %300 = vmatpush1.xpose.msra.mxu0 0.0
        %301 = vmatprep.subr.mxu0 0.0
        %302 = vmatpush1.xpose.msra.mxu0 0.0
        %303 = vmatprep.subr.mxu0 0.0
        %304 = vmatpush1.xpose.msra.mxu0 0.0
        %305 = vmatprep.subr.mxu0 0.0
        %306 = vmatpush1.xpose.msra.mxu0 0.0
        %307 = vmatprep.subr.mxu0 0.0
        %308 = vmatpush1.xpose.msra.mxu0 0.0
        %309 = vmatprep.subr.mxu0 0.0
        %310 = vmatpush1.xpose.msra.mxu0 0.0
        %311 = vmatprep.subr.mxu0 0.0
        %312 = vmatpush1.xpose.msra.mxu0 0.0
        %313 = vmatprep.subr.mxu0 0.0
        %314 = vmatpush1.xpose.msra.mxu0 0.0
        %315 = vmatprep.subr.mxu0 0.0
        %316 = vmatpush1.xpose.msra.mxu0 0.0
        %317 = vmatprep.subr.mxu0 0.0
        %318 = vmatpush1.xpose.msra.mxu0 0.0
        %319 = vmatprep.subr.mxu0 0.0
        %320 = vmatpush1.xpose.msra.mxu0 0.0
        %321 = vmatprep.subr.mxu0 0.0
        %322 = vmatpush1.xpose.msra.mxu0 0.0
        %323 = vmatprep.subr.mxu0 0.0
        %324 = vmatpush1.xpose.msra.mxu0 0.0
        %325 = vmatprep.subr.mxu0 0.0
        %326 = vmatpush1.xpose.msra.mxu0 0.0
        %327 = vmatprep.subr.mxu0 0.0
        %328 = vmatpush1.xpose.msra.mxu0 0.0
        %329 = vmatprep.subr.mxu0 0.0
        %330 = vmatpush1.xpose.msra.mxu0 0.0
        %331 = vmatprep.mubr.f32.mxu0 0.0
        %332 = vmatmul.mubr.f32.gmra.mrb[0].mxu0 %v262
        %v333 = vpop.f32.mrb[0].mxu0
        %v334 = vadd.f32 0.0, %v333
        %v335 = vpop.f32.mrb[0].mxu0
        %336 = vdwg.mxu0
        %v337 = vmul.f32 %v334, 0.35355338
        %v338 = vlaneseq
        %v339 = vshrl.u32 %v338, 7
        %v340 = vlaneseq
        %v341 = vand.u32 %v340, 127
        %vm342 = vcmp.ge.s32.totalorder %v339, %v341
        %v343 = vsel %vm342, %v337, -1e+30
        %v344 = vsel %vm260, %v343, -inf
        %345 = vmax.xlane.f32.xlu0 %v344
        %v346 = vpop.xlane.xlu0 %345
        %v347 = vsub.f32 %v343, %v346
        %v348 = vmul.f32 %v347, 1.442695
        %v349 = vpow.pop %v348
        %v350 = vsel %vm260, %v349, 0.0
        %351 = vadd.xlane.f32.xlu0 %v350
        %v352 = vpop.xlane.xlu0 %351
        %v353 = vrcp.pop %v352
        %v354 = vmul.f32 %v349, %v353
        %v356 = vsel %vm260, %v354, 0
        %358 = vmatprep.subr.mxu0 0.0
        %359 = vmatpush1.msra.mxu0 %v259
        %360 = vmatprep.subr.mxu0 0.0
        %361 = vmatpush1.msra.mxu0 0.0
        %362 = vmatprep.subr.mxu0 0.0
        %363 = vmatpush1.msra.mxu0 0.0
        %364 = vmatprep.subr.mxu0 0.0
        %365 = vmatpush1.msra.mxu0 0.0
        %366 = vmatprep.subr.mxu0 0.0
        %367 = vmatpush1.msra.mxu0 0.0
        %368 = vmatprep.subr.mxu0 0.0
        %369 = vmatpush1.msra.mxu0 0.0
        %370 = vmatprep.subr.mxu0 0.0
        %371 = vmatpush1.msra.mxu0 0.0
        %372 = vmatprep.subr.mxu0 0.0
        %373 = vmatpush1.msra.mxu0 0.0
        %374 = vmatprep.subr.mxu0 0.0
        %375 = vmatpush1.msra.mxu0 0.0
        %376 = vmatprep.subr.mxu0 0.0
        %377 = vmatpush1.msra.mxu0 0.0
        %378 = vmatprep.subr.mxu0 0.0
        %379 = vmatpush1.msra.mxu0 0.0
        %380 = vmatprep.subr.mxu0 0.0
        %381 = vmatpush1.msra.mxu0 0.0
        %382 = vmatprep.subr.mxu0 0.0
        %383 = vmatpush1.msra.mxu0 0.0
        %384 = vmatprep.subr.mxu0 0.0
        %385 = vmatpush1.msra.mxu0 0.0
        %386 = vmatprep.subr.mxu0 0.0
        %387 = vmatpush1.msra.mxu0 0.0
        %388 = vmatprep.subr.mxu0 0.0
        %389 = vmatpush1.msra.mxu0 0.0
        %390 = vmatprep.subr.mxu0 0.0
        %391 = vmatpush1.msra.mxu0 0.0
        %392 = vmatprep.subr.mxu0 0.0
        %393 = vmatpush1.msra.mxu0 0.0
        %394 = vmatprep.subr.mxu0 0.0
        %395 = vmatpush1.msra.mxu0 0.0
        %396 = vmatprep.subr.mxu0 0.0
        %397 = vmatpush1.msra.mxu0 0.0
        %398 = vmatprep.subr.mxu0 0.0
        %399 = vmatpush1.msra.mxu0 0.0
        %400 = vmatprep.subr.mxu0 0.0
        %401 = vmatpush1.msra.mxu0 0.0
        %402 = vmatprep.subr.mxu0 0.0
        %403 = vmatpush1.msra.mxu0 0.0
        %404 = vmatprep.subr.mxu0 0.0
        %405 = vmatpush1.msra.mxu0 0.0
        %406 = vmatprep.subr.mxu0 0.0
        %407 = vmatpush1.msra.mxu0 0.0
        %408 = vmatprep.subr.mxu0 0.0
        %409 = vmatpush1.msra.mxu0 0.0
        %410 = vmatprep.subr.mxu0 0.0
        %411 = vmatpush1.msra.mxu0 0.0
        %412 = vmatprep.subr.mxu0 0.0
        %413 = vmatpush1.msra.mxu0 0.0
        %414 = vmatprep.subr.mxu0 0.0
        %415 = vmatpush1.msra.mxu0 0.0
        %416 = vmatprep.subr.mxu0 0.0
        %417 = vmatpush1.msra.mxu0 0.0
        %418 = vmatprep.subr.mxu0 0.0
        %419 = vmatpush1.msra.mxu0 0.0
        %420 = vmatprep.subr.mxu0 0.0
        %421 = vmatpush1.msra.mxu0 0.0
        %422 = vmatprep.mubr.f32.mxu0 0.0
        %423 = vmatmul.mubr.f32.gmra.mrb[0].mxu0 %v356
        %v424 = vpop.f32.mrb[0].mxu0
        %v425 = vadd.f32 0.0, %v424
        %v426 = vpop.f32.mrb[0].mxu0
        %427 = vdwg.mxu0
        %428 = vst.msk [vmem:[%s256] sm:$0xff] %vm260, %v425
        %s429 = sand.u32 %s109, 1
        %s430 = scalar_lea.sflag [#allocation4], %s429
        %s431 = sand.u32 %s109, 1
        %s432 = smul.addr %s431, 8
        %s433 = scalar_lea.vmem [#allocation8], %s432
        // Predicated region
        $region45: #{_lambda_.9} parent=31 // pred_check
          %p434 = pneg %p119
        $region46: #{_lambda_.9} parent=31 // pred_check_branch
          %436 = sbr.rel (%p434) target = $region48
        $region47: #{_lambda_.9} parent=31 // pred_region
          %s438 = ssub.s32 128, 128
          %439 = vsyncadd %s430, %s438
          %s440 = smul.addr %s23, 128
          %s441 = scalar_lea.hbm %s3, %s440
          %s443 = sshll.u32 %s433, 4
          %s444 = int_to_ptr.vmem [resolvable:$true] %s443
          %446 = dma.vmem_to_hbm [thread:$0]  %s444, 128, %s441, %s430
        $region48: #{_lambda_.9} parent=31 // pred_fallthru
          _
      $region32: #{_lambda_.9} parent=5 // pred_fallthru
        _
      %p447 = scmp.le.s32.totalorder 2, %s18
      // Predicated region
      $region49: #{_lambda_.9} parent=5 // pred_check
        %p448 = pneg %p447
      $region50: #{_lambda_.9} parent=5 // pred_check_branch
        %450 = sbr.rel (%p448) target = $region52
      $region51: #{_lambda_.9} parent=5 // pred_region
        %s451 = ssub.s32 %s18, 2
        // Predicated region
        $region53: #{_lambda_.9} parent=51 // pred_check
          %p452 = pneg %p125
        $region54: #{_lambda_.9} parent=51 // pred_check_branch
          %454 = sbr.rel (%p452) target = $region56
        $region55: #{_lambda_.9} parent=51 // pred_region
          %s455 = sand.u32 %s110, 1
          %s456 = scalar_lea.sflag [#allocation4], %s455
          %s457 = sand.u32 %s110, 1
          %s458 = smul.addr %s457, 8
          %s459 = scalar_lea.vmem [#allocation8], %s458
          %460 = dma.done %s456, 128
        $region56: #{_lambda_.9} parent=51 // pred_fallthru
          _
      $region52: #{_lambda_.9} parent=5 // pred_fallthru
        _
    $region6: #{_lambda_.9} parent=1 // loop_footer
      %s22 = sadd.s32 1, %s18
    $region7: #{_lambda_.9} parent=1 // loop_footer_branch
      %17 = sbr.rel target = $region3
    $region8: #{_lambda_.9} parent=1 // loop_exit
      _
    %461 = vsyncpa [#allocation3], 1
    %s462 = scalar_lea.sflag [#allocation3], 1
    %463 = vsyncpa %s462, 1
    %464 = vsyncpa [#allocation6], 1
    %s465 = scalar_lea.sflag [#allocation6], 1
    %466 = vsyncpa %s465, 1
    %467 = vsyncpa [#allocation4], 1
    %s468 = scalar_lea.sflag [#allocation4], 1
    %469 = vsyncpa %s468, 1

// kernel: _lambda_.12
$region0: #{_lambda_.12}
  #allocation0 [shape = 'u32[]', space=smem, size = 0x4, offset = 0x4, fixed_abs, tag = 'smem constant byte address 0x4 - core index']
  #allocation1 [shape = 'u32[144,128]{1,0:T(1,128)}', space=vmem, size = 0x12000, scoped, tag = 'internal scratch']
  #allocation2 [shape = 'f32[16,128]{1,0:T(8,128)}', space=vmem, size = 0x2000, scoped, tag = 'scratch operand']
  %s0 = inlined_call_operand.hbm [shape: f32[16,32], index: 0, kind: input, shape index: {}]
  %s1 = inlined_call_operand.hbm [shape: f32[32,128], index: 1, kind: input, shape index: {}]
  %s2 = inlined_call_operand.hbm [shape: f32[16,128], index: 2, kind: output, shape index: {}]
  %s3 = sld [smem:[#allocation0]]
  $region34: #{_lambda_.12} parent=0
    _
  %s5 = ssub.s32 1, %s3
  %s6 = scalar_select 0, %s5, %s3
  $region1: #{_lambda_.12} parent=0
    #allocation3 [shape = 'u8[8192]{0}', space=vmem, size = 0x2000, scoped, tag = 'input window, operand 0, single buffered']
    #allocation4 [shape = 's32[1]{0}', space=sflag, size = 0x4, scoped, tag = 'scoped memory for _lambda_.12']
    #allocation5 [shape = 's32[1]{0}', space=sflag, size = 0x4, scoped, tag = 'scoped memory for _lambda_.12']
    #allocation6 [shape = 'u8[16384]{0}', space=vmem, size = 0x4000, scoped, tag = 'input window, operand 1, single buffered']
    #allocation7 [shape = 's32[1]{0}', space=sflag, size = 0x4, scoped, tag = 'scoped memory for _lambda_.12']
    #allocation8 [shape = 'u8[8192]{0}', space=vmem, size = 0x2000, scoped, tag = 'output window, operand 0, single buffered']
    %7 = vsyncpa [#allocation4], 0
    %8 = vsyncpa [#allocation7], 0
    %9 = vsyncpa [#allocation5], 0
    // Predicated region
    $region2: #{_lambda_.12} parent=1 // pred_check
      _
    $region3: #{_lambda_.12} parent=1 // pred_check_branch
      %11 = sbr.rel (0) target = $region5
    $region4: #{_lambda_.12} parent=1 // pred_region
      %s13 = ssub.s32 256, 256
      %14 = vsyncadd [#allocation4], %s13
      %s15 = sshll.u32 [#allocation3], 4
      %s16 = int_to_ptr.vmem [resolvable:$true] %s15
      %21 = dma.hbm_to_vmem [thread:$0]  %s0, 256, %s16, [#allocation4], 128, 128, 8
    $region5: #{_lambda_.12} parent=1 // pred_fallthru
      _
    // Predicated region
    $region6: #{_lambda_.12} parent=1 // pred_check
      _
    $region7: #{_lambda_.12} parent=1 // pred_check_branch
      %23 = sbr.rel (0) target = $region9
    $region8: #{_lambda_.12} parent=1 // pred_region
      %s25 = ssub.s32 512, 512
      %26 = vsyncadd [#allocation7], %s25
      %s27 = sshll.u32 [#allocation6], 4
      %s28 = int_to_ptr.vmem [resolvable:$true] %s27
      %33 = dma.hbm_to_vmem [thread:$0]  %s1, 512, %s28, [#allocation7], 128, 128, 8
    $region9: #{_lambda_.12} parent=1 // pred_fallthru
      _
    // Predicated region
    $region10: #{_lambda_.12} parent=1 // pred_check
      _
    $region11: #{_lambda_.12} parent=1 // pred_check_branch
      %35 = sbr.rel (0) target = $region13
    $region12: #{_lambda_.12} parent=1 // pred_region
      %36 = dma.done [#allocation4], 256
    $region13: #{_lambda_.12} parent=1 // pred_fallthru
      _
    // Predicated region
    $region14: #{_lambda_.12} parent=1 // pred_check
      _
    $region15: #{_lambda_.12} parent=1 // pred_check_branch
      %38 = sbr.rel (0) target = $region17
    $region16: #{_lambda_.12} parent=1 // pred_region
      %39 = dma.done [#allocation7], 512
    $region17: #{_lambda_.12} parent=1 // pred_fallthru
      _
    %p40 = scmp.eq.s32.totalorder 0, 0
    // Predicated region
    $region18: #{_lambda_.12} parent=1 // pred_check
      %p41 = pneg %p40
    $region19: #{_lambda_.12} parent=1 // pred_check_branch
      %43 = sbr.rel (%p41) target = $region21
    $region20: #{_lambda_.12} parent=1 // pred_region
      %44 = vst [vmem:[#allocation2] sm:$0xff] 0.0
      %45 = vst [vmem:[#allocation2 + $0x8] sm:$0xff] 0.0
    $region21: #{_lambda_.12} parent=1 // pred_fallthru
      _
    %v46 = vld [vmem:[#allocation2] sm:$0xff]
    %v47 = vld [vmem:[#allocation2 + $0x8] sm:$0xff]
    %v48 = vld [vmem:[#allocation3] sm:$0xff]
    %v49 = vld [vmem:[#allocation3 + $0x8] sm:$0xff]
    %v50 = vld [vmem:[#allocation6] sm:$0xff]
    %v51 = vld [vmem:[#allocation6 + $0x8] sm:$0xff]
    %v52 = vld [vmem:[#allocation6 + $0x10] sm:$0xff]
    %v53 = vld [vmem:[#allocation6 + $0x18] sm:$0xff]
    %vm54 = vcmask 261120
    %v56 = vsel %vm54, %v48, 0
    %v59 = vsel %vm54, %v49, 0
    %61 = vmatprep.subr.mxu0 0.0
    %62 = vmatpush1.msra.mxu0 %v50
    %63 = vmatprep.subr.mxu0 0.0
    %64 = vmatpush1.msra.mxu0 %v51
    %65 = vmatprep.subr.mxu0 0.0
    %66 = vmatpush1.msra.mxu0 %v52
    %67 = vmatprep.subr.mxu0 0.0
    %68 = vmatpush1.msra.mxu0 %v53
    %69 = vmatprep.subr.mxu0 0.0
    %70 = vmatpush1.msra.mxu0 0.0
    %71 = vmatprep.subr.mxu0 0.0
    %72 = vmatpush1.msra.mxu0 0.0
    %73 = vmatprep.subr.mxu0 0.0
    %74 = vmatpush1.msra.mxu0 0.0
    %75 = vmatprep.subr.mxu0 0.0
    %76 = vmatpush1.msra.mxu0 0.0
    %77 = vmatprep.subr.mxu0 0.0
    %78 = vmatpush1.msra.mxu0 0.0
    %79 = vmatprep.subr.mxu0 0.0
    %80 = vmatpush1.msra.mxu0 0.0
    %81 = vmatprep.subr.mxu0 0.0
    %82 = vmatpush1.msra.mxu0 0.0
    %83 = vmatprep.subr.mxu0 0.0
    %84 = vmatpush1.msra.mxu0 0.0
    %85 = vmatprep.subr.mxu0 0.0
    %86 = vmatpush1.msra.mxu0 0.0
    %87 = vmatprep.subr.mxu0 0.0
    %88 = vmatpush1.msra.mxu0 0.0
    %89 = vmatprep.subr.mxu0 0.0
    %90 = vmatpush1.msra.mxu0 0.0
    %91 = vmatprep.subr.mxu0 0.0
    %92 = vmatpush1.msra.mxu0 0.0
    %93 = vmatprep.subr.mxu0 0.0
    %94 = vmatpush1.msra.mxu0 0.0
    %95 = vmatprep.subr.mxu0 0.0
    %96 = vmatpush1.msra.mxu0 0.0
    %97 = vmatprep.subr.mxu0 0.0
    %98 = vmatpush1.msra.mxu0 0.0
    %99 = vmatprep.subr.mxu0 0.0
    %100 = vmatpush1.msra.mxu0 0.0
    %101 = vmatprep.subr.mxu0 0.0
    %102 = vmatpush1.msra.mxu0 0.0
    %103 = vmatprep.subr.mxu0 0.0
    %104 = vmatpush1.msra.mxu0 0.0
    %105 = vmatprep.subr.mxu0 0.0
    %106 = vmatpush1.msra.mxu0 0.0
    %107 = vmatprep.subr.mxu0 0.0
    %108 = vmatpush1.msra.mxu0 0.0
    %109 = vmatprep.subr.mxu0 0.0
    %110 = vmatpush1.msra.mxu0 0.0
    %111 = vmatprep.subr.mxu0 0.0
    %112 = vmatpush1.msra.mxu0 0.0
    %113 = vmatprep.subr.mxu0 0.0
    %114 = vmatpush1.msra.mxu0 0.0
    %115 = vmatprep.subr.mxu0 0.0
    %116 = vmatpush1.msra.mxu0 0.0
    %117 = vmatprep.subr.mxu0 0.0
    %118 = vmatpush1.msra.mxu0 0.0
    %119 = vmatprep.subr.mxu0 0.0
    %120 = vmatpush1.msra.mxu0 0.0
    %121 = vmatprep.subr.mxu0 0.0
    %122 = vmatpush1.msra.mxu0 0.0
    %123 = vmatprep.subr.mxu0 0.0
    %124 = vmatpush1.msra.mxu0 0.0
    %125 = vmatprep.mubr.f32.mxu0 0.0
    %126 = vmatmul.mubr.f32.gmra.mrb[0].mxu0 %v56
    %v127 = vpop.f32.mrb[0].mxu0
    %v128 = vadd.f32 0.0, %v127
    %v129 = vpop.f32.mrb[0].mxu0
    %130 = vmatprep.mubr.f32.mxu0 0.0
    %131 = vmatmul.mubr.f32.gmra.mrb[0].mxu0 %v59
    %v132 = vpop.f32.mrb[0].mxu0
    %v133 = vadd.f32 0.0, %v132
    %v134 = vpop.f32.mrb[0].mxu0
    %135 = vdwg.mxu0
    %v136 = vadd.f32 %v46, %v128
    %v137 = vadd.f32 %v47, %v133
    %138 = vst [vmem:[#allocation2] sm:$0xff] %v136
    %139 = vst [vmem:[#allocation2 + $0x8] sm:$0xff] %v137
    // Predicated region
    $region22: #{_lambda_.12} parent=1 // pred_check
      %p140 = pneg %p40
    $region23: #{_lambda_.12} parent=1 // pred_check_branch
      %142 = sbr.rel (%p140) target = $region25
    $region24: #{_lambda_.12} parent=1 // pred_region
      %v143 = vld [vmem:[#allocation2] sm:$0xff]
      %v144 = vld [vmem:[#allocation2 + $0x8] sm:$0xff]
      %145 = vst [vmem:[#allocation8] sm:$0xff] %v143
      %146 = vst [vmem:[#allocation8 + $0x8] sm:$0xff] %v144
    $region25: #{_lambda_.12} parent=1 // pred_fallthru
      _
    // Predicated region
    $region26: #{_lambda_.12} parent=1 // pred_check
      _
    $region27: #{_lambda_.12} parent=1 // pred_check_branch
      %148 = sbr.rel (0) target = $region29
    $region28: #{_lambda_.12} parent=1 // pred_region
      %s150 = ssub.s32 256, 256
      %151 = vsyncadd [#allocation5], %s150
      %s152 = sshll.u32 [#allocation8], 4
      %s153 = int_to_ptr.vmem [resolvable:$true] %s152
      %158 = dma.vmem_to_hbm [thread:$0]  %s153, 256, %s2, [#allocation5], 128, 128, 8
    $region29: #{_lambda_.12} parent=1 // pred_fallthru
      _
    // Predicated region
    $region30: #{_lambda_.12} parent=1 // pred_check
      _
    $region31: #{_lambda_.12} parent=1 // pred_check_branch
      %160 = sbr.rel (0) target = $region33
    $region32: #{_lambda_.12} parent=1 // pred_region
      %161 = dma.done [#allocation5], 256
    $region33: #{_lambda_.12} parent=1 // pred_fallthru
      _
    %162 = vsyncpa [#allocation4], 1
    %163 = vsyncpa [#allocation7], 1
    %164 = vsyncpa [#allocation5], 1

// kernel: _lambda_.10
$region0: #{_lambda_.10}
  #allocation0 [shape = 'u32[]', space=smem, size = 0x4, offset = 0x4, fixed_abs, tag = 'smem constant byte address 0x4 - core index']
  #allocation1 [shape = 'u32[144,128]{1,0:T(1,128)}', space=vmem, size = 0x12000, scoped, tag = 'internal scratch']
  #allocation2 [shape = 'f32[16,32]{1,0:T(8,128)}', space=vmem, size = 0x2000, scoped, tag = 'scratch operand']
  %s0 = inlined_call_operand.hbm [shape: f32[16,32], index: 0, kind: input, shape index: {}]
  %s1 = inlined_call_operand.hbm [shape: f32[32,32], index: 1, kind: input, shape index: {}]
  %s2 = inlined_call_operand.hbm [shape: f32[16,32], index: 2, kind: output, shape index: {}]
  %s3 = sld [smem:[#allocation0]]
  $region34: #{_lambda_.10} parent=0
    _
  %s5 = ssub.s32 1, %s3
  %s6 = scalar_select 0, %s5, %s3
  $region1: #{_lambda_.10} parent=0
    #allocation3 [shape = 'u8[8192]{0}', space=vmem, size = 0x2000, scoped, tag = 'input window, operand 0, single buffered']
    #allocation4 [shape = 's32[1]{0}', space=sflag, size = 0x4, scoped, tag = 'scoped memory for _lambda_.10']
    #allocation5 [shape = 's32[1]{0}', space=sflag, size = 0x4, scoped, tag = 'scoped memory for _lambda_.10']
    #allocation6 [shape = 'u8[16384]{0}', space=vmem, size = 0x4000, scoped, tag = 'input window, operand 1, single buffered']
    #allocation7 [shape = 's32[1]{0}', space=sflag, size = 0x4, scoped, tag = 'scoped memory for _lambda_.10']
    #allocation8 [shape = 'u8[8192]{0}', space=vmem, size = 0x2000, scoped, tag = 'output window, operand 0, single buffered']
    %7 = vsyncpa [#allocation4], 0
    %8 = vsyncpa [#allocation7], 0
    %9 = vsyncpa [#allocation5], 0
    // Predicated region
    $region2: #{_lambda_.10} parent=1 // pred_check
      _
    $region3: #{_lambda_.10} parent=1 // pred_check_branch
      %11 = sbr.rel (0) target = $region5
    $region4: #{_lambda_.10} parent=1 // pred_region
      %s13 = ssub.s32 256, 256
      %14 = vsyncadd [#allocation4], %s13
      %s15 = sshll.u32 [#allocation3], 4
      %s16 = int_to_ptr.vmem [resolvable:$true] %s15
      %21 = dma.hbm_to_vmem [thread:$0]  %s0, 256, %s16, [#allocation4], 128, 128, 8
    $region5: #{_lambda_.10} parent=1 // pred_fallthru
      _
    // Predicated region
    $region6: #{_lambda_.10} parent=1 // pred_check
      _
    $region7: #{_lambda_.10} parent=1 // pred_check_branch
      %23 = sbr.rel (0) target = $region9
    $region8: #{_lambda_.10} parent=1 // pred_region
      %s25 = ssub.s32 512, 512
      %26 = vsyncadd [#allocation7], %s25
      %s27 = sshll.u32 [#allocation6], 4
      %s28 = int_to_ptr.vmem [resolvable:$true] %s27
      %33 = dma.hbm_to_vmem [thread:$0]  %s1, 512, %s28, [#allocation7], 128, 128, 8
    $region9: #{_lambda_.10} parent=1 // pred_fallthru
      _
    // Predicated region
    $region10: #{_lambda_.10} parent=1 // pred_check
      _
    $region11: #{_lambda_.10} parent=1 // pred_check_branch
      %35 = sbr.rel (0) target = $region13
    $region12: #{_lambda_.10} parent=1 // pred_region
      %36 = dma.done [#allocation4], 256
    $region13: #{_lambda_.10} parent=1 // pred_fallthru
      _
    // Predicated region
    $region14: #{_lambda_.10} parent=1 // pred_check
      _
    $region15: #{_lambda_.10} parent=1 // pred_check_branch
      %38 = sbr.rel (0) target = $region17
    $region16: #{_lambda_.10} parent=1 // pred_region
      %39 = dma.done [#allocation7], 512
    $region17: #{_lambda_.10} parent=1 // pred_fallthru
      _
    %p40 = scmp.eq.s32.totalorder 0, 0
    // Predicated region
    $region18: #{_lambda_.10} parent=1 // pred_check
      %p41 = pneg %p40
    $region19: #{_lambda_.10} parent=1 // pred_check_branch
      %43 = sbr.rel (%p41) target = $region21
    $region20: #{_lambda_.10} parent=1 // pred_region
      %vm44 = vcmask 261120
      %45 = vst.msk [vmem:[#allocation2] sm:$0xff] %vm44, 0.0
      %46 = vst.msk [vmem:[#allocation2 + $0x8] sm:$0xff] %vm44, 0.0
    $region21: #{_lambda_.10} parent=1 // pred_fallthru
      _
    %v47 = vld [vmem:[#allocation2] sm:$0xff]
    %v48 = vld [vmem:[#allocation2 + $0x8] sm:$0xff]
    %v49 = vld [vmem:[#allocation3] sm:$0xff]
    %v50 = vld [vmem:[#allocation3 + $0x8] sm:$0xff]
    %v51 = vld [vmem:[#allocation6] sm:$0xff]
    %v52 = vld [vmem:[#allocation6 + $0x8] sm:$0xff]
    %v53 = vld [vmem:[#allocation6 + $0x10] sm:$0xff]
    %v54 = vld [vmem:[#allocation6 + $0x18] sm:$0xff]
    %vm55 = vcmask 261120
    %v57 = vsel %vm55, %v49, 0
    %v60 = vsel %vm55, %v50, 0
    %62 = vmatprep.subr.mxu0 0.0
    %63 = vmatpush1.msra.mxu0 %v51
    %64 = vmatprep.subr.mxu0 0.0
    %65 = vmatpush1.msra.mxu0 %v52
    %66 = vmatprep.subr.mxu0 0.0
    %67 = vmatpush1.msra.mxu0 %v53
    %68 = vmatprep.subr.mxu0 0.0
    %69 = vmatpush1.msra.mxu0 %v54
    %70 = vmatprep.subr.mxu0 0.0
    %71 = vmatpush1.msra.mxu0 0.0
    %72 = vmatprep.subr.mxu0 0.0
    %73 = vmatpush1.msra.mxu0 0.0
    %74 = vmatprep.subr.mxu0 0.0
    %75 = vmatpush1.msra.mxu0 0.0
    %76 = vmatprep.subr.mxu0 0.0
    %77 = vmatpush1.msra.mxu0 0.0
    %78 = vmatprep.subr.mxu0 0.0
    %79 = vmatpush1.msra.mxu0 0.0
    %80 = vmatprep.subr.mxu0 0.0
    %81 = vmatpush1.msra.mxu0 0.0
    %82 = vmatprep.subr.mxu0 0.0
    %83 = vmatpush1.msra.mxu0 0.0
    %84 = vmatprep.subr.mxu0 0.0
    %85 = vmatpush1.msra.mxu0 0.0
    %86 = vmatprep.subr.mxu0 0.0
    %87 = vmatpush1.msra.mxu0 0.0
    %88 = vmatprep.subr.mxu0 0.0
    %89 = vmatpush1.msra.mxu0 0.0
    %90 = vmatprep.subr.mxu0 0.0
    %91 = vmatpush1.msra.mxu0 0.0
    %92 = vmatprep.subr.mxu0 0.0
    %93 = vmatpush1.msra.mxu0 0.0
    %94 = vmatprep.subr.mxu0 0.0
    %95 = vmatpush1.msra.mxu0 0.0
    %96 = vmatprep.subr.mxu0 0.0
    %97 = vmatpush1.msra.mxu0 0.0
    %98 = vmatprep.subr.mxu0 0.0
    %99 = vmatpush1.msra.mxu0 0.0
    %100 = vmatprep.subr.mxu0 0.0
    %101 = vmatpush1.msra.mxu0 0.0
    %102 = vmatprep.subr.mxu0 0.0
    %103 = vmatpush1.msra.mxu0 0.0
    %104 = vmatprep.subr.mxu0 0.0
    %105 = vmatpush1.msra.mxu0 0.0
    %106 = vmatprep.subr.mxu0 0.0
    %107 = vmatpush1.msra.mxu0 0.0
    %108 = vmatprep.subr.mxu0 0.0
    %109 = vmatpush1.msra.mxu0 0.0
    %110 = vmatprep.subr.mxu0 0.0
    %111 = vmatpush1.msra.mxu0 0.0
    %112 = vmatprep.subr.mxu0 0.0
    %113 = vmatpush1.msra.mxu0 0.0
    %114 = vmatprep.subr.mxu0 0.0
    %115 = vmatpush1.msra.mxu0 0.0
    %116 = vmatprep.subr.mxu0 0.0
    %117 = vmatpush1.msra.mxu0 0.0
    %118 = vmatprep.subr.mxu0 0.0
    %119 = vmatpush1.msra.mxu0 0.0
    %120 = vmatprep.subr.mxu0 0.0
    %121 = vmatpush1.msra.mxu0 0.0
    %122 = vmatprep.subr.mxu0 0.0
    %123 = vmatpush1.msra.mxu0 0.0
    %124 = vmatprep.subr.mxu0 0.0
    %125 = vmatpush1.msra.mxu0 0.0
    %126 = vmatprep.mubr.f32.mxu0 0.0
    %127 = vmatmul.mubr.f32.gmra.mrb[0].mxu0 %v57
    %v128 = vpop.f32.mrb[0].mxu0
    %v129 = vadd.f32 0.0, %v128
    %v130 = vpop.f32.mrb[0].mxu0
    %131 = vmatprep.mubr.f32.mxu0 0.0
    %132 = vmatmul.mubr.f32.gmra.mrb[0].mxu0 %v60
    %v133 = vpop.f32.mrb[0].mxu0
    %v134 = vadd.f32 0.0, %v133
    %v135 = vpop.f32.mrb[0].mxu0
    %136 = vdwg.mxu0
    %v137 = vadd.f32 %v47, %v129
    %v138 = vadd.f32 %v48, %v134
    %139 = vst.msk [vmem:[#allocation2] sm:$0xff] %vm55, %v137
    %140 = vst.msk [vmem:[#allocation2 + $0x8] sm:$0xff] %vm55, %v138
    // Predicated region
    $region22: #{_lambda_.10} parent=1 // pred_check
      %p141 = pneg %p40
    $region23: #{_lambda_.10} parent=1 // pred_check_branch
      %143 = sbr.rel (%p141) target = $region25
    $region24: #{_lambda_.10} parent=1 // pred_region
      %v144 = vld [vmem:[#allocation2] sm:$0xff]
      %v145 = vld [vmem:[#allocation2 + $0x8] sm:$0xff]
      %146 = vst.msk [vmem:[#allocation8] sm:$0xff] %vm55, %v144
      %147 = vst.msk [vmem:[#allocation8 + $0x8] sm:$0xff] %vm55, %v145
    $region25: #{_lambda_.10} parent=1 // pred_fallthru
      _
    // Predicated region
    $region26: #{_lambda_.10} parent=1 // pred_check
      _
    $region27: #{_lambda_.10} parent=1 // pred_check_branch
      %149 = sbr.rel (0) target = $region29
    $region28: #{_lambda_.10} parent=1 // pred_region
      %s151 = ssub.s32 256, 256
      %152 = vsyncadd [#allocation5], %s151
      %s153 = sshll.u32 [#allocation8], 4
      %s154 = int_to_ptr.vmem [resolvable:$true] %s153
      %159 = dma.vmem_to_hbm [thread:$0]  %s154, 256, %s2, [#allocation5], 128, 128, 8
    $region29: #{_lambda_.10} parent=1 // pred_fallthru
      _
    // Predicated region
    $region30: #{_lambda_.10} parent=1 // pred_check
      _
    $region31: #{_lambda_.10} parent=1 // pred_check_branch
      %161 = sbr.rel (0) target = $region33
    $region32: #{_lambda_.10} parent=1 // pred_region
      %162 = dma.done [#allocation5], 256
    $region33: #{_lambda_.10} parent=1 // pred_fallthru
      _
    %163 = vsyncpa [#allocation4], 1
    %164 = vsyncpa [#allocation7], 1
    %165 = vsyncpa [#allocation5], 1

// kernel: _lambda_.13
$region0: #{_lambda_.13}
  #allocation0 [shape = 'u32[]', space=smem, size = 0x4, offset = 0x4, fixed_abs, tag = 'smem constant byte address 0x4 - core index']
  #allocation1 [shape = 'u32[144,128]{1,0:T(1,128)}', space=vmem, size = 0x12000, scoped, tag = 'internal scratch']
  #allocation2 [shape = 'f32[16,32]{1,0:T(8,128)}', space=vmem, size = 0x2000, scoped, tag = 'scratch operand']
  %s0 = inlined_call_operand.hbm [shape: f32[16,128], index: 0, kind: input, shape index: {}]
  %s1 = inlined_call_operand.hbm [shape: f32[128,32], index: 1, kind: input, shape index: {}]
  %s2 = inlined_call_operand.hbm [shape: f32[16,32], index: 2, kind: output, shape index: {}]
  %s3 = sld [smem:[#allocation0]]
  $region34: #{_lambda_.13} parent=0
    _
  %s5 = ssub.s32 1, %s3
  %s6 = scalar_select 0, %s5, %s3
  $region1: #{_lambda_.13} parent=0
    #allocation3 [shape = 'u8[8192]{0}', space=vmem, size = 0x2000, scoped, tag = 'input window, operand 0, single buffered']
    #allocation4 [shape = 's32[1]{0}', space=sflag, size = 0x4, scoped, tag = 'scoped memory for _lambda_.13']
    #allocation5 [shape = 's32[1]{0}', space=sflag, size = 0x4, scoped, tag = 'scoped memory for _lambda_.13']
    #allocation6 [shape = 'u8[65536]{0}', space=vmem, size = 0x10000, scoped, tag = 'input window, operand 1, single buffered']
    #allocation7 [shape = 's32[1]{0}', space=sflag, size = 0x4, scoped, tag = 'scoped memory for _lambda_.13']
    #allocation8 [shape = 'u8[8192]{0}', space=vmem, size = 0x2000, scoped, tag = 'output window, operand 0, single buffered']
    %7 = vsyncpa [#allocation4], 0
    %8 = vsyncpa [#allocation7], 0
    %9 = vsyncpa [#allocation5], 0
    // Predicated region
    $region2: #{_lambda_.13} parent=1 // pred_check
      _
    $region3: #{_lambda_.13} parent=1 // pred_check_branch
      %11 = sbr.rel (0) target = $region5
    $region4: #{_lambda_.13} parent=1 // pred_region
      %s13 = ssub.s32 256, 256
      %14 = vsyncadd [#allocation4], %s13
      %s15 = sshll.u32 [#allocation3], 4
      %s16 = int_to_ptr.vmem [resolvable:$true] %s15
      %21 = dma.hbm_to_vmem [thread:$0]  %s0, 256, %s16, [#allocation4], 128, 128, 8
    $region5: #{_lambda_.13} parent=1 // pred_fallthru
      _
    // Predicated region
    $region6: #{_lambda_.13} parent=1 // pred_check
      _
    $region7: #{_lambda_.13} parent=1 // pred_check_branch
      %23 = sbr.rel (0) target = $region9
    $region8: #{_lambda_.13} parent=1 // pred_region
      %s25 = ssub.s32 2048, 2048
      %26 = vsyncadd [#allocation7], %s25
      %s27 = sshll.u32 [#allocation6], 4
      %s28 = int_to_ptr.vmem [resolvable:$true] %s27
      %33 = dma.hbm_to_vmem [thread:$0]  %s1, 2048, %s28, [#allocation7], 128, 128, 8
    $region9: #{_lambda_.13} parent=1 // pred_fallthru
      _
    // Predicated region
    $region10: #{_lambda_.13} parent=1 // pred_check
      _
    $region11: #{_lambda_.13} parent=1 // pred_check_branch
      %35 = sbr.rel (0) target = $region13
    $region12: #{_lambda_.13} parent=1 // pred_region
      %36 = dma.done [#allocation4], 256
    $region13: #{_lambda_.13} parent=1 // pred_fallthru
      _
    // Predicated region
    $region14: #{_lambda_.13} parent=1 // pred_check
      _
    $region15: #{_lambda_.13} parent=1 // pred_check_branch
      %38 = sbr.rel (0) target = $region17
    $region16: #{_lambda_.13} parent=1 // pred_region
      %39 = dma.done [#allocation7], 2048
    $region17: #{_lambda_.13} parent=1 // pred_fallthru
      _
    %p40 = scmp.eq.s32.totalorder 0, 0
    // Predicated region
    $region18: #{_lambda_.13} parent=1 // pred_check
      %p41 = pneg %p40
    $region19: #{_lambda_.13} parent=1 // pred_check_branch
      %43 = sbr.rel (%p41) target = $region21
    $region20: #{_lambda_.13} parent=1 // pred_region
      %vm44 = vcmask 261120
      %45 = vst.msk [vmem:[#allocation2] sm:$0xff] %vm44, 0.0
      %46 = vst.msk [vmem:[#allocation2 + $0x8] sm:$0xff] %vm44, 0.0
    $region21: #{_lambda_.13} parent=1 // pred_fallthru
      _
    %v47 = vld [vmem:[#allocation2] sm:$0xff]
    %v48 = vld [vmem:[#allocation2 + $0x8] sm:$0xff]
    %v49 = vld [vmem:[#allocation3] sm:$0xff]
    %v50 = vld [vmem:[#allocation3 + $0x8] sm:$0xff]
    %v51 = vld [vmem:[#allocation6] sm:$0xff]
    %v52 = vld [vmem:[#allocation6 + $0x8] sm:$0xff]
    %v53 = vld [vmem:[#allocation6 + $0x10] sm:$0xff]
    %v54 = vld [vmem:[#allocation6 + $0x18] sm:$0xff]
    %v55 = vld [vmem:[#allocation6 + $0x20] sm:$0xff]
    %v56 = vld [vmem:[#allocation6 + $0x28] sm:$0xff]
    %v57 = vld [vmem:[#allocation6 + $0x30] sm:$0xff]
    %v58 = vld [vmem:[#allocation6 + $0x38] sm:$0xff]
    %v59 = vld [vmem:[#allocation6 + $0x40] sm:$0xff]
    %v60 = vld [vmem:[#allocation6 + $0x48] sm:$0xff]
    %v61 = vld [vmem:[#allocation6 + $0x50] sm:$0xff]
    %v62 = vld [vmem:[#allocation6 + $0x58] sm:$0xff]
    %v63 = vld [vmem:[#allocation6 + $0x60] sm:$0xff]
    %v64 = vld [vmem:[#allocation6 + $0x68] sm:$0xff]
    %v65 = vld [vmem:[#allocation6 + $0x70] sm:$0xff]
    %v66 = vld [vmem:[#allocation6 + $0x78] sm:$0xff]
    %67 = vmatprep.subr.mxu0 0.0
    %68 = vmatpush1.msra.mxu0 %v51
    %69 = vmatprep.subr.mxu0 0.0
    %70 = vmatpush1.msra.mxu0 %v52
    %71 = vmatprep.subr.mxu0 0.0
    %72 = vmatpush1.msra.mxu0 %v53
    %73 = vmatprep.subr.mxu0 0.0
    %74 = vmatpush1.msra.mxu0 %v54
    %75 = vmatprep.subr.mxu0 0.0
    %76 = vmatpush1.msra.mxu0 %v55
    %77 = vmatprep.subr.mxu0 0.0
    %78 = vmatpush1.msra.mxu0 %v56
    %79 = vmatprep.subr.mxu0 0.0
    %80 = vmatpush1.msra.mxu0 %v57
    %81 = vmatprep.subr.mxu0 0.0
    %82 = vmatpush1.msra.mxu0 %v58
    %83 = vmatprep.subr.mxu0 0.0
    %84 = vmatpush1.msra.mxu0 %v59
    %85 = vmatprep.subr.mxu0 0.0
    %86 = vmatpush1.msra.mxu0 %v60
    %87 = vmatprep.subr.mxu0 0.0
    %88 = vmatpush1.msra.mxu0 %v61
    %89 = vmatprep.subr.mxu0 0.0
    %90 = vmatpush1.msra.mxu0 %v62
    %91 = vmatprep.subr.mxu0 0.0
    %92 = vmatpush1.msra.mxu0 %v63
    %93 = vmatprep.subr.mxu0 0.0
    %94 = vmatpush1.msra.mxu0 %v64
    %95 = vmatprep.subr.mxu0 0.0
    %96 = vmatpush1.msra.mxu0 %v65
    %97 = vmatprep.subr.mxu0 0.0
    %98 = vmatpush1.msra.mxu0 %v66
    %99 = vmatprep.subr.mxu0 0.0
    %100 = vmatpush1.msra.mxu0 0.0
    %101 = vmatprep.subr.mxu0 0.0
    %102 = vmatpush1.msra.mxu0 0.0
    %103 = vmatprep.subr.mxu0 0.0
    %104 = vmatpush1.msra.mxu0 0.0
    %105 = vmatprep.subr.mxu0 0.0
    %106 = vmatpush1.msra.mxu0 0.0
    %107 = vmatprep.subr.mxu0 0.0
    %108 = vmatpush1.msra.mxu0 0.0
    %109 = vmatprep.subr.mxu0 0.0
    %110 = vmatpush1.msra.mxu0 0.0
    %111 = vmatprep.subr.mxu0 0.0
    %112 = vmatpush1.msra.mxu0 0.0
    %113 = vmatprep.subr.mxu0 0.0
    %114 = vmatpush1.msra.mxu0 0.0
    %115 = vmatprep.subr.mxu0 0.0
    %116 = vmatpush1.msra.mxu0 0.0
    %117 = vmatprep.subr.mxu0 0.0
    %118 = vmatpush1.msra.mxu0 0.0
    %119 = vmatprep.subr.mxu0 0.0
    %120 = vmatpush1.msra.mxu0 0.0
    %121 = vmatprep.subr.mxu0 0.0
    %122 = vmatpush1.msra.mxu0 0.0
    %123 = vmatprep.subr.mxu0 0.0
    %124 = vmatpush1.msra.mxu0 0.0
    %125 = vmatprep.subr.mxu0 0.0
    %126 = vmatpush1.msra.mxu0 0.0
    %127 = vmatprep.subr.mxu0 0.0
    %128 = vmatpush1.msra.mxu0 0.0
    %129 = vmatprep.subr.mxu0 0.0
    %130 = vmatpush1.msra.mxu0 0.0
    %131 = vmatprep.mubr.f32.mxu0 0.0
    %132 = vmatmul.mubr.f32.gmra.mrb[0].mxu0 %v49
    %v133 = vpop.f32.mrb[0].mxu0
    %v134 = vadd.f32 0.0, %v133
    %v135 = vpop.f32.mrb[0].mxu0
    %136 = vmatprep.mubr.f32.mxu0 0.0
    %137 = vmatmul.mubr.f32.gmra.mrb[0].mxu0 %v50
    %v138 = vpop.f32.mrb[0].mxu0
    %v139 = vadd.f32 0.0, %v138
    %v140 = vpop.f32.mrb[0].mxu0
    %141 = vdwg.mxu0
    %v142 = vadd.f32 %v47, %v134
    %v143 = vadd.f32 %v48, %v139
    %vm144 = vcmask 261120
    %145 = vst.msk [vmem:[#allocation2] sm:$0xff] %vm144, %v142
    %146 = vst.msk [vmem:[#allocation2 + $0x8] sm:$0xff] %vm144, %v143
    // Predicated region
    $region22: #{_lambda_.13} parent=1 // pred_check
      %p147 = pneg %p40
    $region23: #{_lambda_.13} parent=1 // pred_check_branch
      %149 = sbr.rel (%p147) target = $region25
    $region24: #{_lambda_.13} parent=1 // pred_region
      %v150 = vld [vmem:[#allocation2] sm:$0xff]
      %v151 = vld [vmem:[#allocation2 + $0x8] sm:$0xff]
      %152 = vst.msk [vmem:[#allocation8] sm:$0xff] %vm144, %v150
      %153 = vst.msk [vmem:[#allocation8 + $0x8] sm:$0xff] %vm144, %v151
    $region25: #{_lambda_.13} parent=1 // pred_fallthru
      _
    // Predicated region
    $region26: #{_lambda_.13} parent=1 // pred_check
      _
    $region27: #{_lambda_.13} parent=1 // pred_check_branch
      %155 = sbr.rel (0) target = $region29
    $region28: #{_lambda_.13} parent=1 // pred_region
      %s157 = ssub.s32 256, 256
      %158 = vsyncadd [#allocation5], %s157
      %s159 = sshll.u32 [#allocation8], 4
      %s160 = int_to_ptr.vmem [resolvable:$true] %s159
      %165 = dma.vmem_to_hbm [thread:$0]  %s160, 256, %s2, [#allocation5], 128, 128, 8
    $region29: #{_lambda_.13} parent=1 // pred_fallthru
      _
    // Predicated region
    $region30: #{_lambda_.13} parent=1 // pred_check
      _
    $region31: #{_lambda_.13} parent=1 // pred_check_branch
      %167 = sbr.rel (0) target = $region33
    $region32: #{_lambda_.13} parent=1 // pred_region
      %168 = dma.done [#allocation5], 256
    $region33: #{_lambda_.13} parent=1 // pred_fallthru
      _
    %169 = vsyncpa [#allocation4], 1
    %170 = vsyncpa [#allocation7], 1
    %171 = vsyncpa [#allocation5], 1

</llo_original>
